<compile_context>
chip_gen: v6e
topology: v6e:2x2x1
jax: 0.10.0
libtpu: 0.0.40
codegen_flags: <defaults>
</compile_context>

<pallas_src>
import numpy as np

import jax
import jax.numpy as jnp
from jax.experimental import pallas as pl
from jax.experimental.pallas import tpu as pltpu


# ----------------------------- Pallas kernel -------------------------------

def _make_encoder_kernel(b_tile, h, w, c1, c2):
    """Builds the fused encoder kernel for a b_tile-image block of (h, w) input."""
    h1, w1 = h // 2, w // 2            # spatial after conv1 (k4 s2 p1)
    h2, w2 = h1 // 2, w1 // 2          # spatial after conv2 (k4 s2 p1) & conv3
    m1, m2 = h1 * w1, h2 * w2          # flattened spatial sizes per image

    def kernel(col1_ref, w1_ref, b1_ref, w2_ref, b2_ref, w3_ref, b3_ref,
               out_ref,
               a1_ref, s1_ref, col2_ref, a2_ref, s2_ref, col3_ref):
        # ---------------- conv1: ONE MXU matmul, K = 16*cin -----------------
        a1 = jnp.dot(col1_ref[...], w1_ref[...],
                     preferred_element_type=jnp.float32)
        a1_ref[...] = jnp.maximum(a1 + b1_ref[...], 0.0)      # (b_tile*m1, c1)

        # Zero the padded scratches once per step -> realizes the conv2/conv3
        # zero padding without any extra work later.
        s1_ref[...] = jnp.zeros(s1_ref.shape, s1_ref.dtype)
        s2_ref[...] = jnp.zeros(s2_ref.shape, s2_ref.dtype)

        # -------- scatter conv1 output into space-to-depth layout -----------
        # s1[b, a, bb, q*c1:(q+1)*c1] = padded_a1[2a+py, 2bb+px, :], q = 2py+px.
        # conv1 rows arrive grouped by output-pixel parity class (wrapper row
        # ordering), so every store below is a contiguous VMEM slice copy.
        for b in range(b_tile):
            for ry in range(2):
                for rx in range(2):
                    cls = 2 * ry + rx
                    q = 2 * (1 - ry) + (1 - rx)
                    base = b * m1 + cls * m2
                    for u in range(h2):
                        s1_ref[b, ry + u, rx:rx + w2,
                               q * c1:(q + 1) * c1] = \
                            a1_ref[base + u * w2: base + (u + 1) * w2, :]

        # -------- conv2 im2col: 4 taps, all contiguous slices of s2d --------
        for b in range(b_tile):
            for da in range(2):
                for db in range(2):
                    t = 2 * da + db
                    for a in range(h2):
                        col2_ref[b * m2 + a * w2: b * m2 + (a + 1) * w2,
                                 t * 4 * c1:(t + 1) * 4 * c1] = \
                            s1_ref[b, a + da, db:db + w2, :]

        # ---------------- conv2: ONE MXU matmul, K = 16*c1 -------------------
        a2 = jnp.dot(col2_ref[...], w2_ref[...],
                     preferred_element_type=jnp.float32)
        a2_ref[...] = jnp.maximum(a2 + b2_ref[...], 0.0)       # (b_tile*m2, c2)

        # -------- scatter conv2 output into zero-padded spatial layout -------
        for b in range(b_tile):
            for a in range(h2):
                s2_ref[b, 1 + a, 1:1 + w2, :] = \
                    a2_ref[b * m2 + a * w2: b * m2 + (a + 1) * w2, :]

        # -------- conv3 im2col: 9 taps, contiguous slices --------------------
        for b in range(b_tile):
            for i in range(3):
                for j in range(3):
                    t = 3 * i + j
                    for a in range(h2):
                        col3_ref[b * m2 + a * w2: b * m2 + (a + 1) * w2,
                                 t * c2:(t + 1) * c2] = \
                            s2_ref[b, a + i, j:j + w2, :]

        # ---------------- conv3: ONE MXU matmul, K = 9*c2 --------------------
        out = jnp.dot(col3_ref[...], w3_ref[...],
                      preferred_element_type=jnp.float32)
        out_ref[...] = (out + b3_ref[...]).astype(out_ref.dtype)

    return kernel


# ------------------------- host-side preparation ----------------------------

def prepare_encoder(params):
    """One-time host-side prep: flatten conv weights for single-matmul layers."""
    w1 = np.asarray(params["w1"], np.float32)        # (4, 4, cin, 32)  HWIO
    w2 = np.asarray(params["w2"], np.float32)        # (4, 4, 32, 64)
    w3 = np.asarray(params["w3"], np.float32)        # (3, 3, 64, emb)
    cin, c1 = w1.shape[2], w1.shape[3]
    c2, emb = w3.shape[2], w3.shape[3]

    # conv1 weights: K ordered (i, j, cin)  -> (16*cin, c1)
    w1_flat = w1.reshape(16 * cin, c1)

    # conv2 weights re-indexed for the space-to-depth formulation:
    #   K ordered (tap=(da,db), q=(py,px), c1) with kernel index i = 2*da+py,
    #   j = 2*db+px  ->  (16*c1, c2) = (512, 64)
    w2_s2d = np.zeros((4, 4, c1, c2), np.float32)
    for da in range(2):
        for db in range(2):
            for py in range(2):
                for px in range(2):
                    w2_s2d[2 * da + db, 2 * py + px] = \
                        w2[2 * da + py, 2 * db + px]
    w2_flat = w2_s2d.reshape(16 * c1, c2)

    # conv3 weights: K ordered (i, j, c2) -> (9*c2, emb)
    w3_flat = w3.reshape(9 * c2, emb)

    return {
        "w1": jnp.asarray(w1_flat),
        "b1": jnp.asarray(params["b1"], jnp.float32).reshape(1, c1),
        "w2": jnp.asarray(w2_flat),
        "b2": jnp.asarray(params["b2"], jnp.float32).reshape(1, c2),
        "w3": jnp.asarray(w3_flat),
        "b3": jnp.asarray(params["b3"], jnp.float32).reshape(1, emb),
    }


def encoder_forward(x_nchw, prep):
    """Full Encoder forward.  Input NCHW, output NCHW (matches PyTorch)."""
    n, cin, h, w = x_nchw.shape
    assert h % 4 == 0 and w % 4 == 0, "two stride-2 convs need h, w % 4 == 0"
    c1 = prep["b1"].shape[1]
    c2 = prep["b2"].shape[1]
    emb = prep["b3"].shape[1]
    h1, w1 = h // 2, w // 2
    h2, w2 = h1 // 2, w1 // 2
    m1, m2 = h1 * w1, h2 * w2
    k1 = 16 * cin

    # Layer-1 im2col with plain XLA ops (raw input is tiny; ~4x blow-up).
    # Rows are ordered by output-pixel parity class (oy%2, ox%2, oy//2, ox//2)
    # so the kernel can scatter conv1's result into space-to-depth layout with
    # contiguous stores only.
    xp = jnp.pad(jnp.transpose(x_nchw, (0, 2, 3, 1)),
                 ((0, 0), (1, 1), (1, 1), (0, 0)))
    pieces = [xp[:, i:i + 2 * h1:2, j:j + 2 * w1:2, :]
              for i in range(4) for j in range(4)]
    col1 = jnp.concatenate(pieces, axis=-1)               # (n, h1, w1, 16*cin)
    col1 = col1.reshape(n, h2, 2, w2, 2, k1)
    col1 = jnp.transpose(col1, (0, 2, 4, 1, 3, 5)).reshape(n * m1, k1)

    # Fold batch into the matmul M dimension, but keep >= 2 grid steps so both
    # TensorCores get work on megacore parts (v7x).
    b_tile = max(1, n // 2)
    assert n % b_tile == 0
    grid = (n // b_tile,)

    kernel = _make_encoder_kernel(b_tile, h, w, c1, c2)

    # NOTE: the 6 weight/bias operands have constant index_maps, so Pallas
    # keeps them resident in VMEM across grid steps (no re-DMA); at this size
    # the default double-buffer reservation (< 0.5 MiB) is far under budget.
    out_flat = pl.pallas_call(
        kernel,
        out_shape=jax.ShapeDtypeStruct((n * m2, emb), jnp.float32),
        grid=grid,
        in_specs=[
            pl.BlockSpec((b_tile * m1, k1), lambda i: (i, 0)),
            pl.BlockSpec(prep["w1"].shape, lambda i: (0, 0)),
            pl.BlockSpec(prep["b1"].shape, lambda i: (0, 0)),
            pl.BlockSpec(prep["w2"].shape, lambda i: (0, 0)),
            pl.BlockSpec(prep["b2"].shape, lambda i: (0, 0)),
            pl.BlockSpec(prep["w3"].shape, lambda i: (0, 0)),
            pl.BlockSpec(prep["b3"].shape, lambda i: (0, 0)),
        ],
        out_specs=pl.BlockSpec((b_tile * m2, emb), lambda i: (i, 0)),
        scratch_shapes=[
            pltpu.VMEM((b_tile * m1, c1), jnp.float32),                 # a1
            pltpu.VMEM((b_tile, h2 + 1, w2 + 1, 4 * c1), jnp.float32),  # s2d(a1)
            pltpu.VMEM((b_tile * m2, 16 * c1), jnp.float32),            # im2col-2
            pltpu.VMEM((b_tile * m2, c2), jnp.float32),                 # a2
            pltpu.VMEM((b_tile, h2 + 2, w2 + 2, c2), jnp.float32),      # pad(a2)
            pltpu.VMEM((b_tile * m2, 9 * c2), jnp.float32),             # im2col-3
        ],
        compiler_params=pltpu.CompilerParams(
            dimension_semantics=("parallel",)),
    )(col1, prep["w1"], prep["b1"], prep["w2"], prep["b2"],
      prep["w3"], prep["b3"])

    out = out_flat.reshape(n, h2, w2, emb)
    return jnp.transpose(out, (0, 3, 1, 2))


# --------------------------- param initialization ---------------------------

def init_params(key, in_channels, embedding_dim):
    """Deterministic synthetic params (HWIO weight layout)."""
    k1, k2, k3, k4, k5, k6 = jax.random.split(key, 6)

    def winit(k, shape):
        fan_in = shape[0] * shape[1] * shape[2]
        return (jax.random.normal(k, shape, jnp.float32)
                / jnp.sqrt(fan_in)).astype(jnp.float32)

    return {
        "w1": winit(k1, (4, 4, in_channels, 32)),
        "b1": 0.01 * jax.random.normal(k2, (32,), jnp.float32),
        "w2": winit(k3, (4, 4, 32, 64)),
        "b2": 0.01 * jax.random.normal(k4, (64,), jnp.float32),
        "w3": winit(k5, (3, 3, 64, embedding_dim)),
        "b3": 0.01 * jax.random.normal(k6, (embedding_dim,), jnp.float32),
    }


# --------------------------- reference (pure JAX) ----------------------------

def _ref_conv(x_nchw, w_hwio, b, stride, pad):
    out = jax.lax.conv_general_dilated(
        x_nchw, w_hwio,
        window_strides=(stride, stride),
        padding=((pad, pad), (pad, pad)),
        dimension_numbers=("NCHW", "HWIO", "NCHW"),
    )
    return out + b.reshape(1, -1, 1, 1)


def encoder_forward_ref(x_nchw, p):
    x = jax.nn.relu(_ref_conv(x_nchw, p["w1"], p["b1"], 2, 1))
    x = jax.nn.relu(_ref_conv(x, p["w2"], p["b2"], 2, 1))
    return _ref_conv(x, p["w3"], p["b3"], 1, 1)


# --------------------------------- main -------------------------------------

if __name__ == "__main__":
    in_channels, embedding_dim = 4, 16
    batch, spatial = 2, 16

    key = jax.random.PRNGKey(0)
    kx, kp = jax.random.split(key)
    x = jax.random.normal(kx, (batch, in_channels, spatial, spatial),
                          jnp.float32)
    params = init_params(kp, in_channels, embedding_dim)

    prep = prepare_encoder(params)              # host-side, one time
    fwd = jax.jit(encoder_forward)

    out = jax.block_until_ready(fwd(x, prep))
    assert out.shape == (batch, embedding_dim, spatial // 4, spatial // 4), \
        out.shape

    ref = jax.block_until_ready(encoder_forward_ref(x, params))
    max_err = float(jnp.max(jnp.abs(out - ref)))
    assert jnp.allclose(out, ref, atol=1e-3, rtol=1e-3), max_err

    print("KERNEL_OK")
</pallas_src>

<mosaic_0001>
module attributes {stable_mosaic.version = 11 : i64} {
  func.func @kernel(%arg0: i32, %arg1: memref<64x64xf32, #tpu.memory_space<vmem>>, %arg2: memref<64x32xf32, #tpu.memory_space<vmem>>, %arg3: memref<1x32xf32, #tpu.memory_space<vmem>>, %arg4: memref<512x64xf32, #tpu.memory_space<vmem>>, %arg5: memref<1x64xf32, #tpu.memory_space<vmem>>, %arg6: memref<576x16xf32, #tpu.memory_space<vmem>>, %arg7: memref<1x16xf32, #tpu.memory_space<vmem>>, %arg8: memref<16x16xf32, #tpu.memory_space<vmem>>, %arg9: memref<64x32xf32, #tpu.memory_space<vmem>>, %arg10: memref<1x5x5x128xf32, #tpu.memory_space<vmem>>, %arg11: memref<16x512xf32, #tpu.memory_space<vmem>>, %arg12: memref<16x64xf32, #tpu.memory_space<vmem>>, %arg13: memref<1x6x6x64xf32, #tpu.memory_space<vmem>>, %arg14: memref<16x576xf32, #tpu.memory_space<vmem>>) attributes {dimension_semantics = [#tpu.dimension_semantics<parallel>], iteration_bounds = array<i64: 2>, scalar_prefetch = 0 : i64, scratch_operands = 6 : i64, tpu.core_type = #tpu.core_type<tc>, window_params = [{transform_indices = @transform_0, window_bounds = array<i64: 64, 64>}, {pipeline_mode = #tpu.pipeline_mode<synchronous>, transform_indices = @transform_1, window_bounds = array<i64: 64, 32>}, {pipeline_mode = #tpu.pipeline_mode<synchronous>, transform_indices = @transform_2, window_bounds = array<i64: 1, 32>}, {pipeline_mode = #tpu.pipeline_mode<synchronous>, transform_indices = @transform_3, window_bounds = array<i64: 512, 64>}, {pipeline_mode = #tpu.pipeline_mode<synchronous>, transform_indices = @transform_4, window_bounds = array<i64: 1, 64>}, {pipeline_mode = #tpu.pipeline_mode<synchronous>, transform_indices = @transform_5, window_bounds = array<i64: 576, 16>}, {pipeline_mode = #tpu.pipeline_mode<synchronous>, transform_indices = @transform_6, window_bounds = array<i64: 1, 16>}, {transform_indices = @transform_7, window_bounds = array<i64: 16, 16>}]} {
    %c0 = arith.constant 0 : index
    %c0_0 = arith.constant 0 : index
    %0 = vector.load %arg1[%c0, %c0_0] : memref<64x64xf32, #tpu.memory_space<vmem>>, vector<64x64xf32>
    %c0_1 = arith.constant 0 : index
    %c0_2 = arith.constant 0 : index
    %1 = vector.load %arg2[%c0_1, %c0_2] : memref<64x32xf32, #tpu.memory_space<vmem>>, vector<64x32xf32>
    %cst = arith.constant dense<0.000000e+00> : vector<64x32xf32>
    %2 = tpu.matmul %0, %1, %cst {dimension_numbers = #tpu.dot_dimension_numbers<[1], [0], [0], [1], [0, 0, 1, 1], [], []>} : vector<64x64xf32>, vector<64x32xf32>, vector<64x32xf32> -> vector<64x32xf32>
    %c0_3 = arith.constant 0 : index
    %c0_4 = arith.constant 0 : index
    %3 = vector.load %arg3[%c0_3, %c0_4] : memref<1x32xf32, #tpu.memory_space<vmem>>, vector<1x32xf32>
    %4 = vector.broadcast %3 : vector<1x32xf32> to vector<64x32xf32>
    %5 = arith.addf %2, %4 : vector<64x32xf32>
    %cst_5 = arith.constant 0.000000e+00 : f32
    %6 = vector.broadcast %cst_5 : f32 to vector<64x32xf32>
    %7 = arith.maximumf %5, %6 : vector<64x32xf32>
    %c0_6 = arith.constant 0 : index
    %c0_7 = arith.constant 0 : index
    %8 = vector.load %arg9[%c0_6, %c0_7] : memref<64x32xf32, #tpu.memory_space<vmem>>, vector<64x32xf32>
    tpu.vector_store %arg9[%c0_6, %c0_7], %7 {strides = array<i32>} : memref<64x32xf32, #tpu.memory_space<vmem>>, vector<64x32xf32>,
    %cst_8 = arith.constant 0.000000e+00 : f32
    %9 = vector.broadcast %cst_8 : f32 to vector<1x5x5x128xf32>
    %c0_9 = arith.constant 0 : index
    %c0_10 = arith.constant 0 : index
    %c0_11 = arith.constant 0 : index
    %c0_12 = arith.constant 0 : index
    %10 = vector.load %arg10[%c0_9, %c0_10, %c0_11, %c0_12] : memref<1x5x5x128xf32, #tpu.memory_space<vmem>>, vector<1x5x5x128xf32>
    tpu.vector_store %arg10[%c0_9, %c0_10, %c0_11, %c0_12], %9 {strides = array<i32>} : memref<1x5x5x128xf32, #tpu.memory_space<vmem>>, vector<1x5x5x128xf32>,
    %cst_13 = arith.constant 0.000000e+00 : f32
    %11 = vector.broadcast %cst_13 : f32 to vector<1x6x6x64xf32>
    %c0_14 = arith.constant 0 : index
    %c0_15 = arith.constant 0 : index
    %c0_16 = arith.constant 0 : index
    %c0_17 = arith.constant 0 : index
    %12 = vector.load %arg13[%c0_14, %c0_15, %c0_16, %c0_17] : memref<1x6x6x64xf32, #tpu.memory_space<vmem>>, vector<1x6x6x64xf32>
    tpu.vector_store %arg13[%c0_14, %c0_15, %c0_16, %c0_17], %11 {strides = array<i32>} : memref<1x6x6x64xf32, #tpu.memory_space<vmem>>, vector<1x6x6x64xf32>,
    %c0_18 = arith.constant 0 : index
    %c0_19 = arith.constant 0 : index
    %13 = vector.load %arg9[%c0_18, %c0_19] : memref<64x32xf32, #tpu.memory_space<vmem>>, vector<4x32xf32>
    %c0_20 = arith.constant 0 : index
    %c0_21 = arith.constant 0 : index
    %c0_22 = arith.constant 0 : index
    %c96 = arith.constant 96 : index
    %14 = vector.load %arg10[%c0_20, %c0_21, %c0_22, %c96] : memref<1x5x5x128xf32, #tpu.memory_space<vmem>>, vector<1x1x4x32xf32>
    %15 = vector.shape_cast %14 : vector<1x1x4x32xf32> to vector<4x32xf32>
    %16 = vector.shape_cast %13 : vector<4x32xf32> to vector<1x1x4x32xf32>
    tpu.vector_store %arg10[%c0_20, %c0_21, %c0_22, %c96], %16 {strides = array<i32>} : memref<1x5x5x128xf32, #tpu.memory_space<vmem>>, vector<1x1x4x32xf32>,
    %c4 = arith.constant 4 : index
    %c0_23 = arith.constant 0 : index
    %17 = vector.load %arg9[%c4, %c0_23] : memref<64x32xf32, #tpu.memory_space<vmem>>, vector<4x32xf32>
    %c0_24 = arith.constant 0 : index
    %c1 = arith.constant 1 : index
    %c0_25 = arith.constant 0 : index
    %c96_26 = arith.constant 96 : index
    %18 = vector.load %arg10[%c0_24, %c1, %c0_25, %c96_26] : memref<1x5x5x128xf32, #tpu.memory_space<vmem>>, vector<1x1x4x32xf32>
    %19 = vector.shape_cast %18 : vector<1x1x4x32xf32> to vector<4x32xf32>
    %20 = vector.shape_cast %17 : vector<4x32xf32> to vector<1x1x4x32xf32>
    tpu.vector_store %arg10[%c0_24, %c1, %c0_25, %c96_26], %20 {strides = array<i32>} : memref<1x5x5x128xf32, #tpu.memory_space<vmem>>, vector<1x1x4x32xf32>,
    %c8 = arith.constant 8 : index
    %c0_27 = arith.constant 0 : index
    %21 = vector.load %arg9[%c8, %c0_27] : memref<64x32xf32, #tpu.memory_space<vmem>>, vector<4x32xf32>
    %c0_28 = arith.constant 0 : index
    %c2 = arith.constant 2 : index
    %c0_29 = arith.constant 0 : index
    %c96_30 = arith.constant 96 : index
    %22 = vector.load %arg10[%c0_28, %c2, %c0_29, %c96_30] : memref<1x5x5x128xf32, #tpu.memory_space<vmem>>, vector<1x1x4x32xf32>
    %23 = vector.shape_cast %22 : vector<1x1x4x32xf32> to vector<4x32xf32>
    %24 = vector.shape_cast %21 : vector<4x32xf32> to vector<1x1x4x32xf32>
    tpu.vector_store %arg10[%c0_28, %c2, %c0_29, %c96_30], %24 {strides = array<i32>} : memref<1x5x5x128xf32, #tpu.memory_space<vmem>>, vector<1x1x4x32xf32>,
    %c12 = arith.constant 12 : index
    %c0_31 = arith.constant 0 : index
    %25 = vector.load %arg9[%c12, %c0_31] : memref<64x32xf32, #tpu.memory_space<vmem>>, vector<4x32xf32>
    %c0_32 = arith.constant 0 : index
    %c3 = arith.constant 3 : index
    %c0_33 = arith.constant 0 : index
    %c96_34 = arith.constant 96 : index
    %26 = vector.load %arg10[%c0_32, %c3, %c0_33, %c96_34] : memref<1x5x5x128xf32, #tpu.memory_space<vmem>>, vector<1x1x4x32xf32>
    %27 = vector.shape_cast %26 : vector<1x1x4x32xf32> to vector<4x32xf32>
    %28 = vector.shape_cast %25 : vector<4x32xf32> to vector<1x1x4x32xf32>
    tpu.vector_store %arg10[%c0_32, %c3, %c0_33, %c96_34], %28 {strides = array<i32>} : memref<1x5x5x128xf32, #tpu.memory_space<vmem>>, vector<1x1x4x32xf32>,
    %c16 = arith.constant 16 : index
    %c0_35 = arith.constant 0 : index
    %29 = vector.load %arg9[%c16, %c0_35] : memref<64x32xf32, #tpu.memory_space<vmem>>, vector<4x32xf32>
    %c0_36 = arith.constant 0 : index
    %c0_37 = arith.constant 0 : index
    %c1_38 = arith.constant 1 : index
    %c64 = arith.constant 64 : index
    %30 = vector.load %arg10[%c0_36, %c0_37, %c1_38, %c64] : memref<1x5x5x128xf32, #tpu.memory_space<vmem>>, vector<1x1x4x32xf32>
    %31 = vector.shape_cast %30 : vector<1x1x4x32xf32> to vector<4x32xf32>
    %32 = vector.shape_cast %29 : vector<4x32xf32> to vector<1x1x4x32xf32>
    tpu.vector_store %arg10[%c0_36, %c0_37, %c1_38, %c64], %32 {strides = array<i32>} : memref<1x5x5x128xf32, #tpu.memory_space<vmem>>, vector<1x1x4x32xf32>,
    %c20 = arith.constant 20 : index
    %c0_39 = arith.constant 0 : index
    %33 = vector.load %arg9[%c20, %c0_39] : memref<64x32xf32, #tpu.memory_space<vmem>>, vector<4x32xf32>
    %c0_40 = arith.constant 0 : index
    %c1_41 = arith.constant 1 : index
    %c1_42 = arith.constant 1 : index
    %c64_43 = arith.constant 64 : index
    %34 = vector.load %arg10[%c0_40, %c1_41, %c1_42, %c64_43] : memref<1x5x5x128xf32, #tpu.memory_space<vmem>>, vector<1x1x4x32xf32>
    %35 = vector.shape_cast %34 : vector<1x1x4x32xf32> to vector<4x32xf32>
    %36 = vector.shape_cast %33 : vector<4x32xf32> to vector<1x1x4x32xf32>
    tpu.vector_store %arg10[%c0_40, %c1_41, %c1_42, %c64_43], %36 {strides = array<i32>} : memref<1x5x5x128xf32, #tpu.memory_space<vmem>>, vector<1x1x4x32xf32>,
    %c24 = arith.constant 24 : index
    %c0_44 = arith.constant 0 : index
    %37 = vector.load %arg9[%c24, %c0_44] : memref<64x32xf32, #tpu.memory_space<vmem>>, vector<4x32xf32>
    %c0_45 = arith.constant 0 : index
    %c2_46 = arith.constant 2 : index
    %c1_47 = arith.constant 1 : index
    %c64_48 = arith.constant 64 : index
    %38 = vector.load %arg10[%c0_45, %c2_46, %c1_47, %c64_48] : memref<1x5x5x128xf32, #tpu.memory_space<vmem>>, vector<1x1x4x32xf32>
    %39 = vector.shape_cast %38 : vector<1x1x4x32xf32> to vector<4x32xf32>
    %40 = vector.shape_cast %37 : vector<4x32xf32> to vector<1x1x4x32xf32>
    tpu.vector_store %arg10[%c0_45, %c2_46, %c1_47, %c64_48], %40 {strides = array<i32>} : memref<1x5x5x128xf32, #tpu.memory_space<vmem>>, vector<1x1x4x32xf32>,
    %c28 = arith.constant 28 : index
    %c0_49 = arith.constant 0 : index
    %41 = vector.load %arg9[%c28, %c0_49] : memref<64x32xf32, #tpu.memory_space<vmem>>, vector<4x32xf32>
    %c0_50 = arith.constant 0 : index
    %c3_51 = arith.constant 3 : index
    %c1_52 = arith.constant 1 : index
    %c64_53 = arith.constant 64 : index
    %42 = vector.load %arg10[%c0_50, %c3_51, %c1_52, %c64_53] : memref<1x5x5x128xf32, #tpu.memory_space<vmem>>, vector<1x1x4x32xf32>
    %43 = vector.shape_cast %42 : vector<1x1x4x32xf32> to vector<4x32xf32>
    %44 = vector.shape_cast %41 : vector<4x32xf32> to vector<1x1x4x32xf32>
    tpu.vector_store %arg10[%c0_50, %c3_51, %c1_52, %c64_53], %44 {strides = array<i32>} : memref<1x5x5x128xf32, #tpu.memory_space<vmem>>, vector<1x1x4x32xf32>,
    %c32 = arith.constant 32 : index
    %c0_54 = arith.constant 0 : index
    %45 = vector.load %arg9[%c32, %c0_54] : memref<64x32xf32, #tpu.memory_space<vmem>>, vector<4x32xf32>
    %c0_55 = arith.constant 0 : index
    %c1_56 = arith.constant 1 : index
    %c0_57 = arith.constant 0 : index
    %c32_58 = arith.constant 32 : index
    %46 = vector.load %arg10[%c0_55, %c1_56, %c0_57, %c32_58] : memref<1x5x5x128xf32, #tpu.memory_space<vmem>>, vector<1x1x4x32xf32>
    %47 = vector.shape_cast %46 : vector<1x1x4x32xf32> to vector<4x32xf32>
    %48 = vector.shape_cast %45 : vector<4x32xf32> to vector<1x1x4x32xf32>
    tpu.vector_store %arg10[%c0_55, %c1_56, %c0_57, %c32_58], %48 {strides = array<i32>} : memref<1x5x5x128xf32, #tpu.memory_space<vmem>>, vector<1x1x4x32xf32>,
    %c36 = arith.constant 36 : index
    %c0_59 = arith.constant 0 : index
    %49 = vector.load %arg9[%c36, %c0_59] : memref<64x32xf32, #tpu.memory_space<vmem>>, vector<4x32xf32>
    %c0_60 = arith.constant 0 : index
    %c2_61 = arith.constant 2 : index
    %c0_62 = arith.constant 0 : index
    %c32_63 = arith.constant 32 : index
    %50 = vector.load %arg10[%c0_60, %c2_61, %c0_62, %c32_63] : memref<1x5x5x128xf32, #tpu.memory_space<vmem>>, vector<1x1x4x32xf32>
    %51 = vector.shape_cast %50 : vector<1x1x4x32xf32> to vector<4x32xf32>
    %52 = vector.shape_cast %49 : vector<4x32xf32> to vector<1x1x4x32xf32>
    tpu.vector_store %arg10[%c0_60, %c2_61, %c0_62, %c32_63], %52 {strides = array<i32>} : memref<1x5x5x128xf32, #tpu.memory_space<vmem>>, vector<1x1x4x32xf32>,
    %c40 = arith.constant 40 : index
    %c0_64 = arith.constant 0 : index
    %53 = vector.load %arg9[%c40, %c0_64] : memref<64x32xf32, #tpu.memory_space<vmem>>, vector<4x32xf32>
    %c0_65 = arith.constant 0 : index
    %c3_66 = arith.constant 3 : index
    %c0_67 = arith.constant 0 : index
    %c32_68 = arith.constant 32 : index
    %54 = vector.load %arg10[%c0_65, %c3_66, %c0_67, %c32_68] : memref<1x5x5x128xf32, #tpu.memory_space<vmem>>, vector<1x1x4x32xf32>
    %55 = vector.shape_cast %54 : vector<1x1x4x32xf32> to vector<4x32xf32>
    %56 = vector.shape_cast %53 : vector<4x32xf32> to vector<1x1x4x32xf32>
    tpu.vector_store %arg10[%c0_65, %c3_66, %c0_67, %c32_68], %56 {strides = array<i32>} : memref<1x5x5x128xf32, #tpu.memory_space<vmem>>, vector<1x1x4x32xf32>,
    %c44 = arith.constant 44 : index
    %c0_69 = arith.constant 0 : index
    %57 = vector.load %arg9[%c44, %c0_69] : memref<64x32xf32, #tpu.memory_space<vmem>>, vector<4x32xf32>
    %c0_70 = arith.constant 0 : index
    %c4_71 = arith.constant 4 : index
    %c0_72 = arith.constant 0 : index
    %c32_73 = arith.constant 32 : index
    %58 = vector.load %arg10[%c0_70, %c4_71, %c0_72, %c32_73] : memref<1x5x5x128xf32, #tpu.memory_space<vmem>>, vector<1x1x4x32xf32>
    %59 = vector.shape_cast %58 : vector<1x1x4x32xf32> to vector<4x32xf32>
    %60 = vector.shape_cast %57 : vector<4x32xf32> to vector<1x1x4x32xf32>
    tpu.vector_store %arg10[%c0_70, %c4_71, %c0_72, %c32_73], %60 {strides = array<i32>} : memref<1x5x5x128xf32, #tpu.memory_space<vmem>>, vector<1x1x4x32xf32>,
    %c48 = arith.constant 48 : index
    %c0_74 = arith.constant 0 : index
    %61 = vector.load %arg9[%c48, %c0_74] : memref<64x32xf32, #tpu.memory_space<vmem>>, vector<4x32xf32>
    %c0_75 = arith.constant 0 : index
    %c1_76 = arith.constant 1 : index
    %c1_77 = arith.constant 1 : index
    %c0_78 = arith.constant 0 : index
    %62 = vector.load %arg10[%c0_75, %c1_76, %c1_77, %c0_78] : memref<1x5x5x128xf32, #tpu.memory_space<vmem>>, vector<1x1x4x32xf32>
    %63 = vector.shape_cast %62 : vector<1x1x4x32xf32> to vector<4x32xf32>
    %64 = vector.shape_cast %61 : vector<4x32xf32> to vector<1x1x4x32xf32>
    tpu.vector_store %arg10[%c0_75, %c1_76, %c1_77, %c0_78], %64 {strides = array<i32>} : memref<1x5x5x128xf32, #tpu.memory_space<vmem>>, vector<1x1x4x32xf32>,
    %c52 = arith.constant 52 : index
    %c0_79 = arith.constant 0 : index
    %65 = vector.load %arg9[%c52, %c0_79] : memref<64x32xf32, #tpu.memory_space<vmem>>, vector<4x32xf32>
    %c0_80 = arith.constant 0 : index
    %c2_81 = arith.constant 2 : index
    %c1_82 = arith.constant 1 : index
    %c0_83 = arith.constant 0 : index
    %66 = vector.load %arg10[%c0_80, %c2_81, %c1_82, %c0_83] : memref<1x5x5x128xf32, #tpu.memory_space<vmem>>, vector<1x1x4x32xf32>
    %67 = vector.shape_cast %66 : vector<1x1x4x32xf32> to vector<4x32xf32>
    %68 = vector.shape_cast %65 : vector<4x32xf32> to vector<1x1x4x32xf32>
    tpu.vector_store %arg10[%c0_80, %c2_81, %c1_82, %c0_83], %68 {strides = array<i32>} : memref<1x5x5x128xf32, #tpu.memory_space<vmem>>, vector<1x1x4x32xf32>,
    %c56 = arith.constant 56 : index
    %c0_84 = arith.constant 0 : index
    %69 = vector.load %arg9[%c56, %c0_84] : memref<64x32xf32, #tpu.memory_space<vmem>>, vector<4x32xf32>
    %c0_85 = arith.constant 0 : index
    %c3_86 = arith.constant 3 : index
    %c1_87 = arith.constant 1 : index
    %c0_88 = arith.constant 0 : index
    %70 = vector.load %arg10[%c0_85, %c3_86, %c1_87, %c0_88] : memref<1x5x5x128xf32, #tpu.memory_space<vmem>>, vector<1x1x4x32xf32>
    %71 = vector.shape_cast %70 : vector<1x1x4x32xf32> to vector<4x32xf32>
    %72 = vector.shape_cast %69 : vector<4x32xf32> to vector<1x1x4x32xf32>
    tpu.vector_store %arg10[%c0_85, %c3_86, %c1_87, %c0_88], %72 {strides = array<i32>} : memref<1x5x5x128xf32, #tpu.memory_space<vmem>>, vector<1x1x4x32xf32>,
    %c60 = arith.constant 60 : index
    %c0_89 = arith.constant 0 : index
    %73 = vector.load %arg9[%c60, %c0_89] : memref<64x32xf32, #tpu.memory_space<vmem>>, vector<4x32xf32>
    %c0_90 = arith.constant 0 : index
    %c4_91 = arith.constant 4 : index
    %c1_92 = arith.constant 1 : index
    %c0_93 = arith.constant 0 : index
    %74 = vector.load %arg10[%c0_90, %c4_91, %c1_92, %c0_93] : memref<1x5x5x128xf32, #tpu.memory_space<vmem>>, vector<1x1x4x32xf32>
    %75 = vector.shape_cast %74 : vector<1x1x4x32xf32> to vector<4x32xf32>
    %76 = vector.shape_cast %73 : vector<4x32xf32> to vector<1x1x4x32xf32>
    tpu.vector_store %arg10[%c0_90, %c4_91, %c1_92, %c0_93], %76 {strides = array<i32>} : memref<1x5x5x128xf32, #tpu.memory_space<vmem>>, vector<1x1x4x32xf32>,
    %c0_94 = arith.constant 0 : index
    %c0_95 = arith.constant 0 : index
    %c0_96 = arith.constant 0 : index
    %c0_97 = arith.constant 0 : index
    %77 = vector.load %arg10[%c0_94, %c0_95, %c0_96, %c0_97] : memref<1x5x5x128xf32, #tpu.memory_space<vmem>>, vector<1x1x4x128xf32>
    %78 = vector.shape_cast %77 : vector<1x1x4x128xf32> to vector<4x128xf32>
    %c0_98 = arith.constant 0 : index
    %c0_99 = arith.constant 0 : index
    %79 = vector.load %arg11[%c0_98, %c0_99] : memref<16x512xf32, #tpu.memory_space<vmem>>, vector<4x128xf32>
    tpu.vector_store %arg11[%c0_98, %c0_99], %78 {strides = array<i32>} : memref<16x512xf32, #tpu.memory_space<vmem>>, vector<4x128xf32>,
    %c0_100 = arith.constant 0 : index
    %c1_101 = arith.constant 1 : index
    %c0_102 = arith.constant 0 : index
    %c0_103 = arith.constant 0 : index
    %80 = vector.load %arg10[%c0_100, %c1_101, %c0_102, %c0_103] : memref<1x5x5x128xf32, #tpu.memory_space<vmem>>, vector<1x1x4x128xf32>
    %81 = vector.shape_cast %80 : vector<1x1x4x128xf32> to vector<4x128xf32>
    %c4_104 = arith.constant 4 : index
    %c0_105 = arith.constant 0 : index
    %82 = vector.load %arg11[%c4_104, %c0_105] : memref<16x512xf32, #tpu.memory_space<vmem>>, vector<4x128xf32>
    tpu.vector_store %arg11[%c4_104, %c0_105], %81 {strides = array<i32>} : memref<16x512xf32, #tpu.memory_space<vmem>>, vector<4x128xf32>,
    %c0_106 = arith.constant 0 : index
    %c2_107 = arith.constant 2 : index
    %c0_108 = arith.constant 0 : index
    %c0_109 = arith.constant 0 : index
    %83 = vector.load %arg10[%c0_106, %c2_107, %c0_108, %c0_109] : memref<1x5x5x128xf32, #tpu.memory_space<vmem>>, vector<1x1x4x128xf32>
    %84 = vector.shape_cast %83 : vector<1x1x4x128xf32> to vector<4x128xf32>
    %c8_110 = arith.constant 8 : index
    %c0_111 = arith.constant 0 : index
    %85 = vector.load %arg11[%c8_110, %c0_111] : memref<16x512xf32, #tpu.memory_space<vmem>>, vector<4x128xf32>
    tpu.vector_store %arg11[%c8_110, %c0_111], %84 {strides = array<i32>} : memref<16x512xf32, #tpu.memory_space<vmem>>, vector<4x128xf32>,
    %c0_112 = arith.constant 0 : index
    %c3_113 = arith.constant 3 : index
    %c0_114 = arith.constant 0 : index
    %c0_115 = arith.constant 0 : index
    %86 = vector.load %arg10[%c0_112, %c3_113, %c0_114, %c0_115] : memref<1x5x5x128xf32, #tpu.memory_space<vmem>>, vector<1x1x4x128xf32>
    %87 = vector.shape_cast %86 : vector<1x1x4x128xf32> to vector<4x128xf32>
    %c12_116 = arith.constant 12 : index
    %c0_117 = arith.constant 0 : index
    %88 = vector.load %arg11[%c12_116, %c0_117] : memref<16x512xf32, #tpu.memory_space<vmem>>, vector<4x128xf32>
    tpu.vector_store %arg11[%c12_116, %c0_117], %87 {strides = array<i32>} : memref<16x512xf32, #tpu.memory_space<vmem>>, vector<4x128xf32>,
    %c0_118 = arith.constant 0 : index
    %c0_119 = arith.constant 0 : index
    %c1_120 = arith.constant 1 : index
    %c0_121 = arith.constant 0 : index
    %89 = vector.load %arg10[%c0_118, %c0_119, %c1_120, %c0_121] : memref<1x5x5x128xf32, #tpu.memory_space<vmem>>, vector<1x1x4x128xf32>
    %90 = vector.shape_cast %89 : vector<1x1x4x128xf32> to vector<4x128xf32>
    %c0_122 = arith.constant 0 : index
    %c128 = arith.constant 128 : index
    %91 = vector.load %arg11[%c0_122, %c128] : memref<16x512xf32, #tpu.memory_space<vmem>>, vector<4x128xf32>
    tpu.vector_store %arg11[%c0_122, %c128], %90 {strides = array<i32>} : memref<16x512xf32, #tpu.memory_space<vmem>>, vector<4x128xf32>,
    %c0_123 = arith.constant 0 : index
    %c1_124 = arith.constant 1 : index
    %c1_125 = arith.constant 1 : index
    %c0_126 = arith.constant 0 : index
    %92 = vector.load %arg10[%c0_123, %c1_124, %c1_125, %c0_126] : memref<1x5x5x128xf32, #tpu.memory_space<vmem>>, vector<1x1x4x128xf32>
    %93 = vector.shape_cast %92 : vector<1x1x4x128xf32> to vector<4x128xf32>
    %c4_127 = arith.constant 4 : index
    %c128_128 = arith.constant 128 : index
    %94 = vector.load %arg11[%c4_127, %c128_128] : memref<16x512xf32, #tpu.memory_space<vmem>>, vector<4x128xf32>
    tpu.vector_store %arg11[%c4_127, %c128_128], %93 {strides = array<i32>} : memref<16x512xf32, #tpu.memory_space<vmem>>, vector<4x128xf32>,
    %c0_129 = arith.constant 0 : index
    %c2_130 = arith.constant 2 : index
    %c1_131 = arith.constant 1 : index
    %c0_132 = arith.constant 0 : index
    %95 = vector.load %arg10[%c0_129, %c2_130, %c1_131, %c0_132] : memref<1x5x5x128xf32, #tpu.memory_space<vmem>>, vector<1x1x4x128xf32>
    %96 = vector.shape_cast %95 : vector<1x1x4x128xf32> to vector<4x128xf32>
    %c8_133 = arith.constant 8 : index
    %c128_134 = arith.constant 128 : index
    %97 = vector.load %arg11[%c8_133, %c128_134] : memref<16x512xf32, #tpu.memory_space<vmem>>, vector<4x128xf32>
    tpu.vector_store %arg11[%c8_133, %c128_134], %96 {strides = array<i32>} : memref<16x512xf32, #tpu.memory_space<vmem>>, vector<4x128xf32>,
    %c0_135 = arith.constant 0 : index
    %c3_136 = arith.constant 3 : index
    %c1_137 = arith.constant 1 : index
    %c0_138 = arith.constant 0 : index
    %98 = vector.load %arg10[%c0_135, %c3_136, %c1_137, %c0_138] : memref<1x5x5x128xf32, #tpu.memory_space<vmem>>, vector<1x1x4x128xf32>
    %99 = vector.shape_cast %98 : vector<1x1x4x128xf32> to vector<4x128xf32>
    %c12_139 = arith.constant 12 : index
    %c128_140 = arith.constant 128 : index
    %100 = vector.load %arg11[%c12_139, %c128_140] : memref<16x512xf32, #tpu.memory_space<vmem>>, vector<4x128xf32>
    tpu.vector_store %arg11[%c12_139, %c128_140], %99 {strides = array<i32>} : memref<16x512xf32, #tpu.memory_space<vmem>>, vector<4x128xf32>,
    %c0_141 = arith.constant 0 : index
    %c1_142 = arith.constant 1 : index
    %c0_143 = arith.constant 0 : index
    %c0_144 = arith.constant 0 : index
    %101 = vector.load %arg10[%c0_141, %c1_142, %c0_143, %c0_144] : memref<1x5x5x128xf32, #tpu.memory_space<vmem>>, vector<1x1x4x128xf32>
    %102 = vector.shape_cast %101 : vector<1x1x4x128xf32> to vector<4x128xf32>
    %c0_145 = arith.constant 0 : index
    %c256 = arith.constant 256 : index
    %103 = vector.load %arg11[%c0_145, %c256] : memref<16x512xf32, #tpu.memory_space<vmem>>, vector<4x128xf32>
    tpu.vector_store %arg11[%c0_145, %c256], %102 {strides = array<i32>} : memref<16x512xf32, #tpu.memory_space<vmem>>, vector<4x128xf32>,
    %c0_146 = arith.constant 0 : index
    %c2_147 = arith.constant 2 : index
    %c0_148 = arith.constant 0 : index
    %c0_149 = arith.constant 0 : index
    %104 = vector.load %arg10[%c0_146, %c2_147, %c0_148, %c0_149] : memref<1x5x5x128xf32, #tpu.memory_space<vmem>>, vector<1x1x4x128xf32>
    %105 = vector.shape_cast %104 : vector<1x1x4x128xf32> to vector<4x128xf32>
    %c4_150 = arith.constant 4 : index
    %c256_151 = arith.constant 256 : index
    %106 = vector.load %arg11[%c4_150, %c256_151] : memref<16x512xf32, #tpu.memory_space<vmem>>, vector<4x128xf32>
    tpu.vector_store %arg11[%c4_150, %c256_151], %105 {strides = array<i32>} : memref<16x512xf32, #tpu.memory_space<vmem>>, vector<4x128xf32>,
    %c0_152 = arith.constant 0 : index
    %c3_153 = arith.constant 3 : index
    %c0_154 = arith.constant 0 : index
    %c0_155 = arith.constant 0 : index
    %107 = vector.load %arg10[%c0_152, %c3_153, %c0_154, %c0_155] : memref<1x5x5x128xf32, #tpu.memory_space<vmem>>, vector<1x1x4x128xf32>
    %108 = vector.shape_cast %107 : vector<1x1x4x128xf32> to vector<4x128xf32>
    %c8_156 = arith.constant 8 : index
    %c256_157 = arith.constant 256 : index
    %109 = vector.load %arg11[%c8_156, %c256_157] : memref<16x512xf32, #tpu.memory_space<vmem>>, vector<4x128xf32>
    tpu.vector_store %arg11[%c8_156, %c256_157], %108 {strides = array<i32>} : memref<16x512xf32, #tpu.memory_space<vmem>>, vector<4x128xf32>,
    %c0_158 = arith.constant 0 : index
    %c4_159 = arith.constant 4 : index
    %c0_160 = arith.constant 0 : index
    %c0_161 = arith.constant 0 : index
    %110 = vector.load %arg10[%c0_158, %c4_159, %c0_160, %c0_161] : memref<1x5x5x128xf32, #tpu.memory_space<vmem>>, vector<1x1x4x128xf32>
    %111 = vector.shape_cast %110 : vector<1x1x4x128xf32> to vector<4x128xf32>
    %c12_162 = arith.constant 12 : index
    %c256_163 = arith.constant 256 : index
    %112 = vector.load %arg11[%c12_162, %c256_163] : memref<16x512xf32, #tpu.memory_space<vmem>>, vector<4x128xf32>
    tpu.vector_store %arg11[%c12_162, %c256_163], %111 {strides = array<i32>} : memref<16x512xf32, #tpu.memory_space<vmem>>, vector<4x128xf32>,
    %c0_164 = arith.constant 0 : index
    %c1_165 = arith.constant 1 : index
    %c1_166 = arith.constant 1 : index
    %c0_167 = arith.constant 0 : index
    %113 = vector.load %arg10[%c0_164, %c1_165, %c1_166, %c0_167] : memref<1x5x5x128xf32, #tpu.memory_space<vmem>>, vector<1x1x4x128xf32>
    %114 = vector.shape_cast %113 : vector<1x1x4x128xf32> to vector<4x128xf32>
    %c0_168 = arith.constant 0 : index
    %c384 = arith.constant 384 : index
    %115 = vector.load %arg11[%c0_168, %c384] : memref<16x512xf32, #tpu.memory_space<vmem>>, vector<4x128xf32>
    tpu.vector_store %arg11[%c0_168, %c384], %114 {strides = array<i32>} : memref<16x512xf32, #tpu.memory_space<vmem>>, vector<4x128xf32>,
    %c0_169 = arith.constant 0 : index
    %c2_170 = arith.constant 2 : index
    %c1_171 = arith.constant 1 : index
    %c0_172 = arith.constant 0 : index
    %116 = vector.load %arg10[%c0_169, %c2_170, %c1_171, %c0_172] : memref<1x5x5x128xf32, #tpu.memory_space<vmem>>, vector<1x1x4x128xf32>
    %117 = vector.shape_cast %116 : vector<1x1x4x128xf32> to vector<4x128xf32>
    %c4_173 = arith.constant 4 : index
    %c384_174 = arith.constant 384 : index
    %118 = vector.load %arg11[%c4_173, %c384_174] : memref<16x512xf32, #tpu.memory_space<vmem>>, vector<4x128xf32>
    tpu.vector_store %arg11[%c4_173, %c384_174], %117 {strides = array<i32>} : memref<16x512xf32, #tpu.memory_space<vmem>>, vector<4x128xf32>,
    %c0_175 = arith.constant 0 : index
    %c3_176 = arith.constant 3 : index
    %c1_177 = arith.constant 1 : index
    %c0_178 = arith.constant 0 : index
    %119 = vector.load %arg10[%c0_175, %c3_176, %c1_177, %c0_178] : memref<1x5x5x128xf32, #tpu.memory_space<vmem>>, vector<1x1x4x128xf32>
    %120 = vector.shape_cast %119 : vector<1x1x4x128xf32> to vector<4x128xf32>
    %c8_179 = arith.constant 8 : index
    %c384_180 = arith.constant 384 : index
    %121 = vector.load %arg11[%c8_179, %c384_180] : memref<16x512xf32, #tpu.memory_space<vmem>>, vector<4x128xf32>
    tpu.vector_store %arg11[%c8_179, %c384_180], %120 {strides = array<i32>} : memref<16x512xf32, #tpu.memory_space<vmem>>, vector<4x128xf32>,
    %c0_181 = arith.constant 0 : index
    %c4_182 = arith.constant 4 : index
    %c1_183 = arith.constant 1 : index
    %c0_184 = arith.constant 0 : index
    %122 = vector.load %arg10[%c0_181, %c4_182, %c1_183, %c0_184] : memref<1x5x5x128xf32, #tpu.memory_space<vmem>>, vector<1x1x4x128xf32>
    %123 = vector.shape_cast %122 : vector<1x1x4x128xf32> to vector<4x128xf32>
    %c12_185 = arith.constant 12 : index
    %c384_186 = arith.constant 384 : index
    %124 = vector.load %arg11[%c12_185, %c384_186] : memref<16x512xf32, #tpu.memory_space<vmem>>, vector<4x128xf32>
    tpu.vector_store %arg11[%c12_185, %c384_186], %123 {strides = array<i32>} : memref<16x512xf32, #tpu.memory_space<vmem>>, vector<4x128xf32>,
    %c0_187 = arith.constant 0 : index
    %c0_188 = arith.constant 0 : index
    %125 = vector.load %arg11[%c0_187, %c0_188] : memref<16x512xf32, #tpu.memory_space<vmem>>, vector<16x512xf32>
    %c0_189 = arith.constant 0 : index
    %c0_190 = arith.constant 0 : index
    %126 = vector.load %arg4[%c0_189, %c0_190] : memref<512x64xf32, #tpu.memory_space<vmem>>, vector<512x64xf32>
    %cst_191 = arith.constant dense<0.000000e+00> : vector<16x64xf32>
    %127 = tpu.matmul %125, %126, %cst_191 {dimension_numbers = #tpu.dot_dimension_numbers<[1], [0], [0], [1], [0, 0, 1, 1], [], []>} : vector<16x512xf32>, vector<512x64xf32>, vector<16x64xf32> -> vector<16x64xf32>
    %c0_192 = arith.constant 0 : index
    %c0_193 = arith.constant 0 : index
    %128 = vector.load %arg5[%c0_192, %c0_193] : memref<1x64xf32, #tpu.memory_space<vmem>>, vector<1x64xf32>
    %129 = vector.broadcast %128 : vector<1x64xf32> to vector<16x64xf32>
    %130 = arith.addf %127, %129 : vector<16x64xf32>
    %cst_194 = arith.constant 0.000000e+00 : f32
    %131 = vector.broadcast %cst_194 : f32 to vector<16x64xf32>
    %132 = arith.maximumf %130, %131 : vector<16x64xf32>
    %c0_195 = arith.constant 0 : index
    %c0_196 = arith.constant 0 : index
    %133 = vector.load %arg12[%c0_195, %c0_196] : memref<16x64xf32, #tpu.memory_space<vmem>>, vector<16x64xf32>
    tpu.vector_store %arg12[%c0_195, %c0_196], %132 {strides = array<i32>} : memref<16x64xf32, #tpu.memory_space<vmem>>, vector<16x64xf32>,
    %c0_197 = arith.constant 0 : index
    %c0_198 = arith.constant 0 : index
    %134 = vector.load %arg12[%c0_197, %c0_198] : memref<16x64xf32, #tpu.memory_space<vmem>>, vector<4x64xf32>
    %c0_199 = arith.constant 0 : index
    %c1_200 = arith.constant 1 : index
    %c1_201 = arith.constant 1 : index
    %c0_202 = arith.constant 0 : index
    %135 = vector.load %arg13[%c0_199, %c1_200, %c1_201, %c0_202] : memref<1x6x6x64xf32, #tpu.memory_space<vmem>>, vector<1x1x4x64xf32>
    %136 = vector.shape_cast %135 : vector<1x1x4x64xf32> to vector<4x64xf32>
    %137 = vector.shape_cast %134 : vector<4x64xf32> to vector<1x1x4x64xf32>
    tpu.vector_store %arg13[%c0_199, %c1_200, %c1_201, %c0_202], %137 {strides = array<i32>} : memref<1x6x6x64xf32, #tpu.memory_space<vmem>>, vector<1x1x4x64xf32>,
    %c4_203 = arith.constant 4 : index
    %c0_204 = arith.constant 0 : index
    %138 = vector.load %arg12[%c4_203, %c0_204] : memref<16x64xf32, #tpu.memory_space<vmem>>, vector<4x64xf32>
    %c0_205 = arith.constant 0 : index
    %c2_206 = arith.constant 2 : index
    %c1_207 = arith.constant 1 : index
    %c0_208 = arith.constant 0 : index
    %139 = vector.load %arg13[%c0_205, %c2_206, %c1_207, %c0_208] : memref<1x6x6x64xf32, #tpu.memory_space<vmem>>, vector<1x1x4x64xf32>
    %140 = vector.shape_cast %139 : vector<1x1x4x64xf32> to vector<4x64xf32>
    %141 = vector.shape_cast %138 : vector<4x64xf32> to vector<1x1x4x64xf32>
    tpu.vector_store %arg13[%c0_205, %c2_206, %c1_207, %c0_208], %141 {strides = array<i32>} : memref<1x6x6x64xf32, #tpu.memory_space<vmem>>, vector<1x1x4x64xf32>,
    %c8_209 = arith.constant 8 : index
    %c0_210 = arith.constant 0 : index
    %142 = vector.load %arg12[%c8_209, %c0_210] : memref<16x64xf32, #tpu.memory_space<vmem>>, vector<4x64xf32>
    %c0_211 = arith.constant 0 : index
    %c3_212 = arith.constant 3 : index
    %c1_213 = arith.constant 1 : index
    %c0_214 = arith.constant 0 : index
    %143 = vector.load %arg13[%c0_211, %c3_212, %c1_213, %c0_214] : memref<1x6x6x64xf32, #tpu.memory_space<vmem>>, vector<1x1x4x64xf32>
    %144 = vector.shape_cast %143 : vector<1x1x4x64xf32> to vector<4x64xf32>
    %145 = vector.shape_cast %142 : vector<4x64xf32> to vector<1x1x4x64xf32>
    tpu.vector_store %arg13[%c0_211, %c3_212, %c1_213, %c0_214], %145 {strides = array<i32>} : memref<1x6x6x64xf32, #tpu.memory_space<vmem>>, vector<1x1x4x64xf32>,
    %c12_215 = arith.constant 12 : index
    %c0_216 = arith.constant 0 : index
    %146 = vector.load %arg12[%c12_215, %c0_216] : memref<16x64xf32, #tpu.memory_space<vmem>>, vector<4x64xf32>
    %c0_217 = arith.constant 0 : index
    %c4_218 = arith.constant 4 : index
    %c1_219 = arith.constant 1 : index
    %c0_220 = arith.constant 0 : index
    %147 = vector.load %arg13[%c0_217, %c4_218, %c1_219, %c0_220] : memref<1x6x6x64xf32, #tpu.memory_space<vmem>>, vector<1x1x4x64xf32>
    %148 = vector.shape_cast %147 : vector<1x1x4x64xf32> to vector<4x64xf32>
    %149 = vector.shape_cast %146 : vector<4x64xf32> to vector<1x1x4x64xf32>
    tpu.vector_store %arg13[%c0_217, %c4_218, %c1_219, %c0_220], %149 {strides = array<i32>} : memref<1x6x6x64xf32, #tpu.memory_space<vmem>>, vector<1x1x4x64xf32>,
    %c0_221 = arith.constant 0 : index
    %c0_222 = arith.constant 0 : index
    %c0_223 = arith.constant 0 : index
    %c0_224 = arith.constant 0 : index
    %150 = vector.load %arg13[%c0_221, %c0_222, %c0_223, %c0_224] : memref<1x6x6x64xf32, #tpu.memory_space<vmem>>, vector<1x1x4x64xf32>
    %151 = vector.shape_cast %150 : vector<1x1x4x64xf32> to vector<4x64xf32>
    %c0_225 = arith.constant 0 : index
    %c0_226 = arith.constant 0 : index
    %152 = vector.load %arg14[%c0_225, %c0_226] : memref<16x576xf32, #tpu.memory_space<vmem>>, vector<4x64xf32>
    tpu.vector_store %arg14[%c0_225, %c0_226], %151 {strides = array<i32>} : memref<16x576xf32, #tpu.memory_space<vmem>>, vector<4x64xf32>,
    %c0_227 = arith.constant 0 : index
    %c1_228 = arith.constant 1 : index
    %c0_229 = arith.constant 0 : index
    %c0_230 = arith.constant 0 : index
    %153 = vector.load %arg13[%c0_227, %c1_228, %c0_229, %c0_230] : memref<1x6x6x64xf32, #tpu.memory_space<vmem>>, vector<1x1x4x64xf32>
    %154 = vector.shape_cast %153 : vector<1x1x4x64xf32> to vector<4x64xf32>
    %c4_231 = arith.constant 4 : index
    %c0_232 = arith.constant 0 : index
    %155 = vector.load %arg14[%c4_231, %c0_232] : memref<16x576xf32, #tpu.memory_space<vmem>>, vector<4x64xf32>
    tpu.vector_store %arg14[%c4_231, %c0_232], %154 {strides = array<i32>} : memref<16x576xf32, #tpu.memory_space<vmem>>, vector<4x64xf32>,
    %c0_233 = arith.constant 0 : index
    %c2_234 = arith.constant 2 : index
    %c0_235 = arith.constant 0 : index
    %c0_236 = arith.constant 0 : index
    %156 = vector.load %arg13[%c0_233, %c2_234, %c0_235, %c0_236] : memref<1x6x6x64xf32, #tpu.memory_space<vmem>>, vector<1x1x4x64xf32>
    %157 = vector.shape_cast %156 : vector<1x1x4x64xf32> to vector<4x64xf32>
    %c8_237 = arith.constant 8 : index
    %c0_238 = arith.constant 0 : index
    %158 = vector.load %arg14[%c8_237, %c0_238] : memref<16x576xf32, #tpu.memory_space<vmem>>, vector<4x64xf32>
    tpu.vector_store %arg14[%c8_237, %c0_238], %157 {strides = array<i32>} : memref<16x576xf32, #tpu.memory_space<vmem>>, vector<4x64xf32>,
    %c0_239 = arith.constant 0 : index
    %c3_240 = arith.constant 3 : index
    %c0_241 = arith.constant 0 : index
    %c0_242 = arith.constant 0 : index
    %159 = vector.load %arg13[%c0_239, %c3_240, %c0_241, %c0_242] : memref<1x6x6x64xf32, #tpu.memory_space<vmem>>, vector<1x1x4x64xf32>
    %160 = vector.shape_cast %159 : vector<1x1x4x64xf32> to vector<4x64xf32>
    %c12_243 = arith.constant 12 : index
    %c0_244 = arith.constant 0 : index
    %161 = vector.load %arg14[%c12_243, %c0_244] : memref<16x576xf32, #tpu.memory_space<vmem>>, vector<4x64xf32>
    tpu.vector_store %arg14[%c12_243, %c0_244], %160 {strides = array<i32>} : memref<16x576xf32, #tpu.memory_space<vmem>>, vector<4x64xf32>,
    %c0_245 = arith.constant 0 : index
    %c0_246 = arith.constant 0 : index
    %c1_247 = arith.constant 1 : index
    %c0_248 = arith.constant 0 : index
    %162 = vector.load %arg13[%c0_245, %c0_246, %c1_247, %c0_248] : memref<1x6x6x64xf32, #tpu.memory_space<vmem>>, vector<1x1x4x64xf32>
    %163 = vector.shape_cast %162 : vector<1x1x4x64xf32> to vector<4x64xf32>
    %c0_249 = arith.constant 0 : index
    %c64_250 = arith.constant 64 : index
    %164 = vector.load %arg14[%c0_249, %c64_250] : memref<16x576xf32, #tpu.memory_space<vmem>>, vector<4x64xf32>
    tpu.vector_store %arg14[%c0_249, %c64_250], %163 {strides = array<i32>} : memref<16x576xf32, #tpu.memory_space<vmem>>, vector<4x64xf32>,
    %c0_251 = arith.constant 0 : index
    %c1_252 = arith.constant 1 : index
    %c1_253 = arith.constant 1 : index
    %c0_254 = arith.constant 0 : index
    %165 = vector.load %arg13[%c0_251, %c1_252, %c1_253, %c0_254] : memref<1x6x6x64xf32, #tpu.memory_space<vmem>>, vector<1x1x4x64xf32>
    %166 = vector.shape_cast %165 : vector<1x1x4x64xf32> to vector<4x64xf32>
    %c4_255 = arith.constant 4 : index
    %c64_256 = arith.constant 64 : index
    %167 = vector.load %arg14[%c4_255, %c64_256] : memref<16x576xf32, #tpu.memory_space<vmem>>, vector<4x64xf32>
    tpu.vector_store %arg14[%c4_255, %c64_256], %166 {strides = array<i32>} : memref<16x576xf32, #tpu.memory_space<vmem>>, vector<4x64xf32>,
    %c0_257 = arith.constant 0 : index
    %c2_258 = arith.constant 2 : index
    %c1_259 = arith.constant 1 : index
    %c0_260 = arith.constant 0 : index
    %168 = vector.load %arg13[%c0_257, %c2_258, %c1_259, %c0_260] : memref<1x6x6x64xf32, #tpu.memory_space<vmem>>, vector<1x1x4x64xf32>
    %169 = vector.shape_cast %168 : vector<1x1x4x64xf32> to vector<4x64xf32>
    %c8_261 = arith.constant 8 : index
    %c64_262 = arith.constant 64 : index
    %170 = vector.load %arg14[%c8_261, %c64_262] : memref<16x576xf32, #tpu.memory_space<vmem>>, vector<4x64xf32>
    tpu.vector_store %arg14[%c8_261, %c64_262], %169 {strides = array<i32>} : memref<16x576xf32, #tpu.memory_space<vmem>>, vector<4x64xf32>,
    %c0_263 = arith.constant 0 : index
    %c3_264 = arith.constant 3 : index
    %c1_265 = arith.constant 1 : index
    %c0_266 = arith.constant 0 : index
    %171 = vector.load %arg13[%c0_263, %c3_264, %c1_265, %c0_266] : memref<1x6x6x64xf32, #tpu.memory_space<vmem>>, vector<1x1x4x64xf32>
    %172 = vector.shape_cast %171 : vector<1x1x4x64xf32> to vector<4x64xf32>
    %c12_267 = arith.constant 12 : index
    %c64_268 = arith.constant 64 : index
    %173 = vector.load %arg14[%c12_267, %c64_268] : memref<16x576xf32, #tpu.memory_space<vmem>>, vector<4x64xf32>
    tpu.vector_store %arg14[%c12_267, %c64_268], %172 {strides = array<i32>} : memref<16x576xf32, #tpu.memory_space<vmem>>, vector<4x64xf32>,
    %c0_269 = arith.constant 0 : index
    %c0_270 = arith.constant 0 : index
    %c2_271 = arith.constant 2 : index
    %c0_272 = arith.constant 0 : index
    %174 = vector.load %arg13[%c0_269, %c0_270, %c2_271, %c0_272] : memref<1x6x6x64xf32, #tpu.memory_space<vmem>>, vector<1x1x4x64xf32>
    %175 = vector.shape_cast %174 : vector<1x1x4x64xf32> to vector<4x64xf32>
    %c0_273 = arith.constant 0 : index
    %c128_274 = arith.constant 128 : index
    %176 = vector.load %arg14[%c0_273, %c128_274] : memref<16x576xf32, #tpu.memory_space<vmem>>, vector<4x64xf32>
    tpu.vector_store %arg14[%c0_273, %c128_274], %175 {strides = array<i32>} : memref<16x576xf32, #tpu.memory_space<vmem>>, vector<4x64xf32>,
    %c0_275 = arith.constant 0 : index
    %c1_276 = arith.constant 1 : index
    %c2_277 = arith.constant 2 : index
    %c0_278 = arith.constant 0 : index
    %177 = vector.load %arg13[%c0_275, %c1_276, %c2_277, %c0_278] : memref<1x6x6x64xf32, #tpu.memory_space<vmem>>, vector<1x1x4x64xf32>
    %178 = vector.shape_cast %177 : vector<1x1x4x64xf32> to vector<4x64xf32>
    %c4_279 = arith.constant 4 : index
    %c128_280 = arith.constant 128 : index
    %179 = vector.load %arg14[%c4_279, %c128_280] : memref<16x576xf32, #tpu.memory_space<vmem>>, vector<4x64xf32>
    tpu.vector_store %arg14[%c4_279, %c128_280], %178 {strides = array<i32>} : memref<16x576xf32, #tpu.memory_space<vmem>>, vector<4x64xf32>,
    %c0_281 = arith.constant 0 : index
    %c2_282 = arith.constant 2 : index
    %c2_283 = arith.constant 2 : index
    %c0_284 = arith.constant 0 : index
    %180 = vector.load %arg13[%c0_281, %c2_282, %c2_283, %c0_284] : memref<1x6x6x64xf32, #tpu.memory_space<vmem>>, vector<1x1x4x64xf32>
    %181 = vector.shape_cast %180 : vector<1x1x4x64xf32> to vector<4x64xf32>
    %c8_285 = arith.constant 8 : index
    %c128_286 = arith.constant 128 : index
    %182 = vector.load %arg14[%c8_285, %c128_286] : memref<16x576xf32, #tpu.memory_space<vmem>>, vector<4x64xf32>
    tpu.vector_store %arg14[%c8_285, %c128_286], %181 {strides = array<i32>} : memref<16x576xf32, #tpu.memory_space<vmem>>, vector<4x64xf32>,
    %c0_287 = arith.constant 0 : index
    %c3_288 = arith.constant 3 : index
    %c2_289 = arith.constant 2 : index
    %c0_290 = arith.constant 0 : index
    %183 = vector.load %arg13[%c0_287, %c3_288, %c2_289, %c0_290] : memref<1x6x6x64xf32, #tpu.memory_space<vmem>>, vector<1x1x4x64xf32>
    %184 = vector.shape_cast %183 : vector<1x1x4x64xf32> to vector<4x64xf32>
    %c12_291 = arith.constant 12 : index
    %c128_292 = arith.constant 128 : index
    %185 = vector.load %arg14[%c12_291, %c128_292] : memref<16x576xf32, #tpu.memory_space<vmem>>, vector<4x64xf32>
    tpu.vector_store %arg14[%c12_291, %c128_292], %184 {strides = array<i32>} : memref<16x576xf32, #tpu.memory_space<vmem>>, vector<4x64xf32>,
    %c0_293 = arith.constant 0 : index
    %c1_294 = arith.constant 1 : index
    %c0_295 = arith.constant 0 : index
    %c0_296 = arith.constant 0 : index
    %186 = vector.load %arg13[%c0_293, %c1_294, %c0_295, %c0_296] : memref<1x6x6x64xf32, #tpu.memory_space<vmem>>, vector<1x1x4x64xf32>
    %187 = vector.shape_cast %186 : vector<1x1x4x64xf32> to vector<4x64xf32>
    %c0_297 = arith.constant 0 : index
    %c192 = arith.constant 192 : index
    %188 = vector.load %arg14[%c0_297, %c192] : memref<16x576xf32, #tpu.memory_space<vmem>>, vector<4x64xf32>
    tpu.vector_store %arg14[%c0_297, %c192], %187 {strides = array<i32>} : memref<16x576xf32, #tpu.memory_space<vmem>>, vector<4x64xf32>,
    %c0_298 = arith.constant 0 : index
    %c2_299 = arith.constant 2 : index
    %c0_300 = arith.constant 0 : index
    %c0_301 = arith.constant 0 : index
    %189 = vector.load %arg13[%c0_298, %c2_299, %c0_300, %c0_301] : memref<1x6x6x64xf32, #tpu.memory_space<vmem>>, vector<1x1x4x64xf32>
    %190 = vector.shape_cast %189 : vector<1x1x4x64xf32> to vector<4x64xf32>
    %c4_302 = arith.constant 4 : index
    %c192_303 = arith.constant 192 : index
    %191 = vector.load %arg14[%c4_302, %c192_303] : memref<16x576xf32, #tpu.memory_space<vmem>>, vector<4x64xf32>
    tpu.vector_store %arg14[%c4_302, %c192_303], %190 {strides = array<i32>} : memref<16x576xf32, #tpu.memory_space<vmem>>, vector<4x64xf32>,
    %c0_304 = arith.constant 0 : index
    %c3_305 = arith.constant 3 : index
    %c0_306 = arith.constant 0 : index
    %c0_307 = arith.constant 0 : index
    %192 = vector.load %arg13[%c0_304, %c3_305, %c0_306, %c0_307] : memref<1x6x6x64xf32, #tpu.memory_space<vmem>>, vector<1x1x4x64xf32>
    %193 = vector.shape_cast %192 : vector<1x1x4x64xf32> to vector<4x64xf32>
    %c8_308 = arith.constant 8 : index
    %c192_309 = arith.constant 192 : index
    %194 = vector.load %arg14[%c8_308, %c192_309] : memref<16x576xf32, #tpu.memory_space<vmem>>, vector<4x64xf32>
    tpu.vector_store %arg14[%c8_308, %c192_309], %193 {strides = array<i32>} : memref<16x576xf32, #tpu.memory_space<vmem>>, vector<4x64xf32>,
    %c0_310 = arith.constant 0 : index
    %c4_311 = arith.constant 4 : index
    %c0_312 = arith.constant 0 : index
    %c0_313 = arith.constant 0 : index
    %195 = vector.load %arg13[%c0_310, %c4_311, %c0_312, %c0_313] : memref<1x6x6x64xf32, #tpu.memory_space<vmem>>, vector<1x1x4x64xf32>
    %196 = vector.shape_cast %195 : vector<1x1x4x64xf32> to vector<4x64xf32>
    %c12_314 = arith.constant 12 : index
    %c192_315 = arith.constant 192 : index
    %197 = vector.load %arg14[%c12_314, %c192_315] : memref<16x576xf32, #tpu.memory_space<vmem>>, vector<4x64xf32>
    tpu.vector_store %arg14[%c12_314, %c192_315], %196 {strides = array<i32>} : memref<16x576xf32, #tpu.memory_space<vmem>>, vector<4x64xf32>,
    %c0_316 = arith.constant 0 : index
    %c1_317 = arith.constant 1 : index
    %c1_318 = arith.constant 1 : index
    %c0_319 = arith.constant 0 : index
    %198 = vector.load %arg13[%c0_316, %c1_317, %c1_318, %c0_319] : memref<1x6x6x64xf32, #tpu.memory_space<vmem>>, vector<1x1x4x64xf32>
    %199 = vector.shape_cast %198 : vector<1x1x4x64xf32> to vector<4x64xf32>
    %c0_320 = arith.constant 0 : index
    %c256_321 = arith.constant 256 : index
    %200 = vector.load %arg14[%c0_320, %c256_321] : memref<16x576xf32, #tpu.memory_space<vmem>>, vector<4x64xf32>
    tpu.vector_store %arg14[%c0_320, %c256_321], %199 {strides = array<i32>} : memref<16x576xf32, #tpu.memory_space<vmem>>, vector<4x64xf32>,
    %c0_322 = arith.constant 0 : index
    %c2_323 = arith.constant 2 : index
    %c1_324 = arith.constant 1 : index
    %c0_325 = arith.constant 0 : index
    %201 = vector.load %arg13[%c0_322, %c2_323, %c1_324, %c0_325] : memref<1x6x6x64xf32, #tpu.memory_space<vmem>>, vector<1x1x4x64xf32>
    %202 = vector.shape_cast %201 : vector<1x1x4x64xf32> to vector<4x64xf32>
    %c4_326 = arith.constant 4 : index
    %c256_327 = arith.constant 256 : index
    %203 = vector.load %arg14[%c4_326, %c256_327] : memref<16x576xf32, #tpu.memory_space<vmem>>, vector<4x64xf32>
    tpu.vector_store %arg14[%c4_326, %c256_327], %202 {strides = array<i32>} : memref<16x576xf32, #tpu.memory_space<vmem>>, vector<4x64xf32>,
    %c0_328 = arith.constant 0 : index
    %c3_329 = arith.constant 3 : index
    %c1_330 = arith.constant 1 : index
    %c0_331 = arith.constant 0 : index
    %204 = vector.load %arg13[%c0_328, %c3_329, %c1_330, %c0_331] : memref<1x6x6x64xf32, #tpu.memory_space<vmem>>, vector<1x1x4x64xf32>
    %205 = vector.shape_cast %204 : vector<1x1x4x64xf32> to vector<4x64xf32>
    %c8_332 = arith.constant 8 : index
    %c256_333 = arith.constant 256 : index
    %206 = vector.load %arg14[%c8_332, %c256_333] : memref<16x576xf32, #tpu.memory_space<vmem>>, vector<4x64xf32>
    tpu.vector_store %arg14[%c8_332, %c256_333], %205 {strides = array<i32>} : memref<16x576xf32, #tpu.memory_space<vmem>>, vector<4x64xf32>,
    %c0_334 = arith.constant 0 : index
    %c4_335 = arith.constant 4 : index
    %c1_336 = arith.constant 1 : index
    %c0_337 = arith.constant 0 : index
    %207 = vector.load %arg13[%c0_334, %c4_335, %c1_336, %c0_337] : memref<1x6x6x64xf32, #tpu.memory_space<vmem>>, vector<1x1x4x64xf32>
    %208 = vector.shape_cast %207 : vector<1x1x4x64xf32> to vector<4x64xf32>
    %c12_338 = arith.constant 12 : index
    %c256_339 = arith.constant 256 : index
    %209 = vector.load %arg14[%c12_338, %c256_339] : memref<16x576xf32, #tpu.memory_space<vmem>>, vector<4x64xf32>
    tpu.vector_store %arg14[%c12_338, %c256_339], %208 {strides = array<i32>} : memref<16x576xf32, #tpu.memory_space<vmem>>, vector<4x64xf32>,
    %c0_340 = arith.constant 0 : index
    %c1_341 = arith.constant 1 : index
    %c2_342 = arith.constant 2 : index
    %c0_343 = arith.constant 0 : index
    %210 = vector.load %arg13[%c0_340, %c1_341, %c2_342, %c0_343] : memref<1x6x6x64xf32, #tpu.memory_space<vmem>>, vector<1x1x4x64xf32>
    %211 = vector.shape_cast %210 : vector<1x1x4x64xf32> to vector<4x64xf32>
    %c0_344 = arith.constant 0 : index
    %c320 = arith.constant 320 : index
    %212 = vector.load %arg14[%c0_344, %c320] : memref<16x576xf32, #tpu.memory_space<vmem>>, vector<4x64xf32>
    tpu.vector_store %arg14[%c0_344, %c320], %211 {strides = array<i32>} : memref<16x576xf32, #tpu.memory_space<vmem>>, vector<4x64xf32>,
    %c0_345 = arith.constant 0 : index
    %c2_346 = arith.constant 2 : index
    %c2_347 = arith.constant 2 : index
    %c0_348 = arith.constant 0 : index
    %213 = vector.load %arg13[%c0_345, %c2_346, %c2_347, %c0_348] : memref<1x6x6x64xf32, #tpu.memory_space<vmem>>, vector<1x1x4x64xf32>
    %214 = vector.shape_cast %213 : vector<1x1x4x64xf32> to vector<4x64xf32>
    %c4_349 = arith.constant 4 : index
    %c320_350 = arith.constant 320 : index
    %215 = vector.load %arg14[%c4_349, %c320_350] : memref<16x576xf32, #tpu.memory_space<vmem>>, vector<4x64xf32>
    tpu.vector_store %arg14[%c4_349, %c320_350], %214 {strides = array<i32>} : memref<16x576xf32, #tpu.memory_space<vmem>>, vector<4x64xf32>,
    %c0_351 = arith.constant 0 : index
    %c3_352 = arith.constant 3 : index
    %c2_353 = arith.constant 2 : index
    %c0_354 = arith.constant 0 : index
    %216 = vector.load %arg13[%c0_351, %c3_352, %c2_353, %c0_354] : memref<1x6x6x64xf32, #tpu.memory_space<vmem>>, vector<1x1x4x64xf32>
    %217 = vector.shape_cast %216 : vector<1x1x4x64xf32> to vector<4x64xf32>
    %c8_355 = arith.constant 8 : index
    %c320_356 = arith.constant 320 : index
    %218 = vector.load %arg14[%c8_355, %c320_356] : memref<16x576xf32, #tpu.memory_space<vmem>>, vector<4x64xf32>
    tpu.vector_store %arg14[%c8_355, %c320_356], %217 {strides = array<i32>} : memref<16x576xf32, #tpu.memory_space<vmem>>, vector<4x64xf32>,
    %c0_357 = arith.constant 0 : index
    %c4_358 = arith.constant 4 : index
    %c2_359 = arith.constant 2 : index
    %c0_360 = arith.constant 0 : index
    %219 = vector.load %arg13[%c0_357, %c4_358, %c2_359, %c0_360] : memref<1x6x6x64xf32, #tpu.memory_space<vmem>>, vector<1x1x4x64xf32>
    %220 = vector.shape_cast %219 : vector<1x1x4x64xf32> to vector<4x64xf32>
    %c12_361 = arith.constant 12 : index
    %c320_362 = arith.constant 320 : index
    %221 = vector.load %arg14[%c12_361, %c320_362] : memref<16x576xf32, #tpu.memory_space<vmem>>, vector<4x64xf32>
    tpu.vector_store %arg14[%c12_361, %c320_362], %220 {strides = array<i32>} : memref<16x576xf32, #tpu.memory_space<vmem>>, vector<4x64xf32>,
    %c0_363 = arith.constant 0 : index
    %c2_364 = arith.constant 2 : index
    %c0_365 = arith.constant 0 : index
    %c0_366 = arith.constant 0 : index
    %222 = vector.load %arg13[%c0_363, %c2_364, %c0_365, %c0_366] : memref<1x6x6x64xf32, #tpu.memory_space<vmem>>, vector<1x1x4x64xf32>
    %223 = vector.shape_cast %222 : vector<1x1x4x64xf32> to vector<4x64xf32>
    %c0_367 = arith.constant 0 : index
    %c384_368 = arith.constant 384 : index
    %224 = vector.load %arg14[%c0_367, %c384_368] : memref<16x576xf32, #tpu.memory_space<vmem>>, vector<4x64xf32>
    tpu.vector_store %arg14[%c0_367, %c384_368], %223 {strides = array<i32>} : memref<16x576xf32, #tpu.memory_space<vmem>>, vector<4x64xf32>,
    %c0_369 = arith.constant 0 : index
    %c3_370 = arith.constant 3 : index
    %c0_371 = arith.constant 0 : index
    %c0_372 = arith.constant 0 : index
    %225 = vector.load %arg13[%c0_369, %c3_370, %c0_371, %c0_372] : memref<1x6x6x64xf32, #tpu.memory_space<vmem>>, vector<1x1x4x64xf32>
    %226 = vector.shape_cast %225 : vector<1x1x4x64xf32> to vector<4x64xf32>
    %c4_373 = arith.constant 4 : index
    %c384_374 = arith.constant 384 : index
    %227 = vector.load %arg14[%c4_373, %c384_374] : memref<16x576xf32, #tpu.memory_space<vmem>>, vector<4x64xf32>
    tpu.vector_store %arg14[%c4_373, %c384_374], %226 {strides = array<i32>} : memref<16x576xf32, #tpu.memory_space<vmem>>, vector<4x64xf32>,
    %c0_375 = arith.constant 0 : index
    %c4_376 = arith.constant 4 : index
    %c0_377 = arith.constant 0 : index
    %c0_378 = arith.constant 0 : index
    %228 = vector.load %arg13[%c0_375, %c4_376, %c0_377, %c0_378] : memref<1x6x6x64xf32, #tpu.memory_space<vmem>>, vector<1x1x4x64xf32>
    %229 = vector.shape_cast %228 : vector<1x1x4x64xf32> to vector<4x64xf32>
    %c8_379 = arith.constant 8 : index
    %c384_380 = arith.constant 384 : index
    %230 = vector.load %arg14[%c8_379, %c384_380] : memref<16x576xf32, #tpu.memory_space<vmem>>, vector<4x64xf32>
    tpu.vector_store %arg14[%c8_379, %c384_380], %229 {strides = array<i32>} : memref<16x576xf32, #tpu.memory_space<vmem>>, vector<4x64xf32>,
    %c0_381 = arith.constant 0 : index
    %c5 = arith.constant 5 : index
    %c0_382 = arith.constant 0 : index
    %c0_383 = arith.constant 0 : index
    %231 = vector.load %arg13[%c0_381, %c5, %c0_382, %c0_383] : memref<1x6x6x64xf32, #tpu.memory_space<vmem>>, vector<1x1x4x64xf32>
    %232 = vector.shape_cast %231 : vector<1x1x4x64xf32> to vector<4x64xf32>
    %c12_384 = arith.constant 12 : index
    %c384_385 = arith.constant 384 : index
    %233 = vector.load %arg14[%c12_384, %c384_385] : memref<16x576xf32, #tpu.memory_space<vmem>>, vector<4x64xf32>
    tpu.vector_store %arg14[%c12_384, %c384_385], %232 {strides = array<i32>} : memref<16x576xf32, #tpu.memory_space<vmem>>, vector<4x64xf32>,
    %c0_386 = arith.constant 0 : index
    %c2_387 = arith.constant 2 : index
    %c1_388 = arith.constant 1 : index
    %c0_389 = arith.constant 0 : index
    %234 = vector.load %arg13[%c0_386, %c2_387, %c1_388, %c0_389] : memref<1x6x6x64xf32, #tpu.memory_space<vmem>>, vector<1x1x4x64xf32>
    %235 = vector.shape_cast %234 : vector<1x1x4x64xf32> to vector<4x64xf32>
    %c0_390 = arith.constant 0 : index
    %c448 = arith.constant 448 : index
    %236 = vector.load %arg14[%c0_390, %c448] : memref<16x576xf32, #tpu.memory_space<vmem>>, vector<4x64xf32>
    tpu.vector_store %arg14[%c0_390, %c448], %235 {strides = array<i32>} : memref<16x576xf32, #tpu.memory_space<vmem>>, vector<4x64xf32>,
    %c0_391 = arith.constant 0 : index
    %c3_392 = arith.constant 3 : index
    %c1_393 = arith.constant 1 : index
    %c0_394 = arith.constant 0 : index
    %237 = vector.load %arg13[%c0_391, %c3_392, %c1_393, %c0_394] : memref<1x6x6x64xf32, #tpu.memory_space<vmem>>, vector<1x1x4x64xf32>
    %238 = vector.shape_cast %237 : vector<1x1x4x64xf32> to vector<4x64xf32>
    %c4_395 = arith.constant 4 : index
    %c448_396 = arith.constant 448 : index
    %239 = vector.load %arg14[%c4_395, %c448_396] : memref<16x576xf32, #tpu.memory_space<vmem>>, vector<4x64xf32>
    tpu.vector_store %arg14[%c4_395, %c448_396], %238 {strides = array<i32>} : memref<16x576xf32, #tpu.memory_space<vmem>>, vector<4x64xf32>,
    %c0_397 = arith.constant 0 : index
    %c4_398 = arith.constant 4 : index
    %c1_399 = arith.constant 1 : index
    %c0_400 = arith.constant 0 : index
    %240 = vector.load %arg13[%c0_397, %c4_398, %c1_399, %c0_400] : memref<1x6x6x64xf32, #tpu.memory_space<vmem>>, vector<1x1x4x64xf32>
    %241 = vector.shape_cast %240 : vector<1x1x4x64xf32> to vector<4x64xf32>
    %c8_401 = arith.constant 8 : index
    %c448_402 = arith.constant 448 : index
    %242 = vector.load %arg14[%c8_401, %c448_402] : memref<16x576xf32, #tpu.memory_space<vmem>>, vector<4x64xf32>
    tpu.vector_store %arg14[%c8_401, %c448_402], %241 {strides = array<i32>} : memref<16x576xf32, #tpu.memory_space<vmem>>, vector<4x64xf32>,
    %c0_403 = arith.constant 0 : index
    %c5_404 = arith.constant 5 : index
    %c1_405 = arith.constant 1 : index
    %c0_406 = arith.constant 0 : index
    %243 = vector.load %arg13[%c0_403, %c5_404, %c1_405, %c0_406] : memref<1x6x6x64xf32, #tpu.memory_space<vmem>>, vector<1x1x4x64xf32>
    %244 = vector.shape_cast %243 : vector<1x1x4x64xf32> to vector<4x64xf32>
    %c12_407 = arith.constant 12 : index
    %c448_408 = arith.constant 448 : index
    %245 = vector.load %arg14[%c12_407, %c448_408] : memref<16x576xf32, #tpu.memory_space<vmem>>, vector<4x64xf32>
    tpu.vector_store %arg14[%c12_407, %c448_408], %244 {strides = array<i32>} : memref<16x576xf32, #tpu.memory_space<vmem>>, vector<4x64xf32>,
    %c0_409 = arith.constant 0 : index
    %c2_410 = arith.constant 2 : index
    %c2_411 = arith.constant 2 : index
    %c0_412 = arith.constant 0 : index
    %246 = vector.load %arg13[%c0_409, %c2_410, %c2_411, %c0_412] : memref<1x6x6x64xf32, #tpu.memory_space<vmem>>, vector<1x1x4x64xf32>
    %247 = vector.shape_cast %246 : vector<1x1x4x64xf32> to vector<4x64xf32>
    %c0_413 = arith.constant 0 : index
    %c512 = arith.constant 512 : index
    %248 = vector.load %arg14[%c0_413, %c512] : memref<16x576xf32, #tpu.memory_space<vmem>>, vector<4x64xf32>
    tpu.vector_store %arg14[%c0_413, %c512], %247 {strides = array<i32>} : memref<16x576xf32, #tpu.memory_space<vmem>>, vector<4x64xf32>,
    %c0_414 = arith.constant 0 : index
    %c3_415 = arith.constant 3 : index
    %c2_416 = arith.constant 2 : index
    %c0_417 = arith.constant 0 : index
    %249 = vector.load %arg13[%c0_414, %c3_415, %c2_416, %c0_417] : memref<1x6x6x64xf32, #tpu.memory_space<vmem>>, vector<1x1x4x64xf32>
    %250 = vector.shape_cast %249 : vector<1x1x4x64xf32> to vector<4x64xf32>
    %c4_418 = arith.constant 4 : index
    %c512_419 = arith.constant 512 : index
    %251 = vector.load %arg14[%c4_418, %c512_419] : memref<16x576xf32, #tpu.memory_space<vmem>>, vector<4x64xf32>
    tpu.vector_store %arg14[%c4_418, %c512_419], %250 {strides = array<i32>} : memref<16x576xf32, #tpu.memory_space<vmem>>, vector<4x64xf32>,
    %c0_420 = arith.constant 0 : index
    %c4_421 = arith.constant 4 : index
    %c2_422 = arith.constant 2 : index
    %c0_423 = arith.constant 0 : index
    %252 = vector.load %arg13[%c0_420, %c4_421, %c2_422, %c0_423] : memref<1x6x6x64xf32, #tpu.memory_space<vmem>>, vector<1x1x4x64xf32>
    %253 = vector.shape_cast %252 : vector<1x1x4x64xf32> to vector<4x64xf32>
    %c8_424 = arith.constant 8 : index
    %c512_425 = arith.constant 512 : index
    %254 = vector.load %arg14[%c8_424, %c512_425] : memref<16x576xf32, #tpu.memory_space<vmem>>, vector<4x64xf32>
    tpu.vector_store %arg14[%c8_424, %c512_425], %253 {strides = array<i32>} : memref<16x576xf32, #tpu.memory_space<vmem>>, vector<4x64xf32>,
    %c0_426 = arith.constant 0 : index
    %c5_427 = arith.constant 5 : index
    %c2_428 = arith.constant 2 : index
    %c0_429 = arith.constant 0 : index
    %255 = vector.load %arg13[%c0_426, %c5_427, %c2_428, %c0_429] : memref<1x6x6x64xf32, #tpu.memory_space<vmem>>, vector<1x1x4x64xf32>
    %256 = vector.shape_cast %255 : vector<1x1x4x64xf32> to vector<4x64xf32>
    %c12_430 = arith.constant 12 : index
    %c512_431 = arith.constant 512 : index
    %257 = vector.load %arg14[%c12_430, %c512_431] : memref<16x576xf32, #tpu.memory_space<vmem>>, vector<4x64xf32>
    tpu.vector_store %arg14[%c12_430, %c512_431], %256 {strides = array<i32>} : memref<16x576xf32, #tpu.memory_space<vmem>>, vector<4x64xf32>,
    %c0_432 = arith.constant 0 : index
    %c0_433 = arith.constant 0 : index
    %258 = vector.load %arg14[%c0_432, %c0_433] : memref<16x576xf32, #tpu.memory_space<vmem>>, vector<16x576xf32>
    %c0_434 = arith.constant 0 : index
    %c0_435 = arith.constant 0 : index
    %259 = vector.load %arg6[%c0_434, %c0_435] : memref<576x16xf32, #tpu.memory_space<vmem>>, vector<576x16xf32>
    %cst_436 = arith.constant dense<0.000000e+00> : vector<16x16xf32>
    %260 = tpu.matmul %258, %259, %cst_436 {dimension_numbers = #tpu.dot_dimension_numbers<[1], [0], [0], [1], [0, 0, 1, 1], [], []>} : vector<16x576xf32>, vector<576x16xf32>, vector<16x16xf32> -> vector<16x16xf32>
    %c0_437 = arith.constant 0 : index
    %c0_438 = arith.constant 0 : index
    %261 = vector.load %arg7[%c0_437, %c0_438] : memref<1x16xf32, #tpu.memory_space<vmem>>, vector<1x16xf32>
    %262 = vector.broadcast %261 : vector<1x16xf32> to vector<16x16xf32>
    %263 = arith.addf %260, %262 : vector<16x16xf32>
    %c0_439 = arith.constant 0 : index
    %c0_440 = arith.constant 0 : index
    %264 = vector.load %arg8[%c0_439, %c0_440] : memref<16x16xf32, #tpu.memory_space<vmem>>, vector<16x16xf32>
    tpu.vector_store %arg8[%c0_439, %c0_440], %263 {strides = array<i32>} : memref<16x16xf32, #tpu.memory_space<vmem>>, vector<16x16xf32>,
    return
  }
  func.func @transform_0(%arg0: i32) -> (i32, i32) {
    %c0_i32 = arith.constant 0 : i32
    %c0_i32_0 = arith.constant 0 : i32
    return %arg0, %c0_i32 : i32, i32
  }
  func.func @transform_1(%arg0: i32) -> (i32, i32) {
    %c0_i32 = arith.constant 0 : i32
    %c0_i32_0 = arith.constant 0 : i32
    %c0_i32_1 = arith.constant 0 : i32
    return %c0_i32, %c0_i32_0 : i32, i32
  }
  func.func @transform_2(%arg0: i32) -> (i32, i32) {
    %c0_i32 = arith.constant 0 : i32
    %c0_i32_0 = arith.constant 0 : i32
    %c0_i32_1 = arith.constant 0 : i32
    return %c0_i32, %c0_i32_0 : i32, i32
  }
  func.func @transform_3(%arg0: i32) -> (i32, i32) {
    %c0_i32 = arith.constant 0 : i32
    %c0_i32_0 = arith.constant 0 : i32
    %c0_i32_1 = arith.constant 0 : i32
    return %c0_i32, %c0_i32_0 : i32, i32
  }
  func.func @transform_4(%arg0: i32) -> (i32, i32) {
    %c0_i32 = arith.constant 0 : i32
    %c0_i32_0 = arith.constant 0 : i32
    %c0_i32_1 = arith.constant 0 : i32
    return %c0_i32, %c0_i32_0 : i32, i32
  }
  func.func @transform_5(%arg0: i32) -> (i32, i32) {
    %c0_i32 = arith.constant 0 : i32
    %c0_i32_0 = arith.constant 0 : i32
    %c0_i32_1 = arith.constant 0 : i32
    return %c0_i32, %c0_i32_0 : i32, i32
  }
  func.func @transform_6(%arg0: i32) -> (i32, i32) {
    %c0_i32 = arith.constant 0 : i32
    %c0_i32_0 = arith.constant 0 : i32
    %c0_i32_1 = arith.constant 0 : i32
    return %c0_i32, %c0_i32_0 : i32, i32
  }
  func.func @transform_7(%arg0: i32) -> (i32, i32) {
    %c0_i32 = arith.constant 0 : i32
    %c0_i32_0 = arith.constant 0 : i32
    return %arg0, %c0_i32 : i32, i32
  }
}

</mosaic_0001>

<llo_original>
// kernel: encoder_forward.1
$region0: #{encoder_forward.1}
  #allocation0 [shape = 'u32[]', space=smem, size = 0x4, offset = 0x4, fixed_abs, tag = 'smem constant byte address 0x4 - core index']
  #allocation1 [shape = 'u32[144,128]{1,0:T(1,128)}', space=vmem, size = 0x12000, scoped, tag = 'internal scratch']
  #allocation2 [shape = 'f32[64,32]{1,0:T(8,128)}', space=vmem, size = 0x8000, scoped, tag = 'scratch operand']
  #allocation3 [shape = 'f32[1,5,5,128]{3,2,1,0:T(8,128)}', space=vmem, size = 0x5000, scoped, tag = 'scratch operand']
  #allocation4 [shape = 'f32[16,512]{1,0:T(8,128)}', space=vmem, size = 0x8000, scoped, tag = 'scratch operand']
  #allocation5 [shape = 'f32[16,64]{1,0:T(8,128)}', space=vmem, size = 0x2000, scoped, tag = 'scratch operand']
  #allocation6 [shape = 'f32[1,6,6,64]{3,2,1,0:T(8,128)}', space=vmem, size = 0x6000, scoped, tag = 'scratch operand']
  #allocation7 [shape = 'f32[16,576]{1,0:T(8,128)}', space=vmem, size = 0xa000, scoped, tag = 'scratch operand']
  %s0 = inlined_call_operand.vmem [shape: f32[128,64], index: 0, kind: input, shape index: {}]
  %s1 = inlined_call_operand.vmem [shape: f32[64,32], index: 1, kind: input, shape index: {}]
  %s2 = inlined_call_operand.vmem [shape: f32[1,32], index: 2, kind: input, shape index: {}]
  %s3 = inlined_call_operand.vmem [shape: f32[512,64], index: 3, kind: input, shape index: {}]
  %s4 = inlined_call_operand.vmem [shape: f32[1,64], index: 4, kind: input, shape index: {}]
  %s5 = inlined_call_operand.vmem [shape: f32[576,16], index: 5, kind: input, shape index: {}]
  %s6 = inlined_call_operand.vmem [shape: f32[1,16], index: 6, kind: input, shape index: {}]
  %s7 = inlined_call_operand.hbm [shape: f32[32,16], index: 7, kind: output, shape index: {}]
  %s8 = sld [smem:[#allocation0]]
  $region61: #{encoder_forward.1} parent=0
    _
  %s10 = ssub.s32 1, %s8
  %s11 = scalar_select 0, %s10, %s8
  $region1: #{encoder_forward.1} parent=0
    #allocation8 [shape = 'u8[16384]{0}', space=vmem, size = 0x4000, scoped, tag = 'output window, operand 0']
    #allocation9 [shape = 's32[2]{0}', space=sflag, size = 0x8, scoped, tag = 'scoped memory for encoder_forward.1']
    %12 = vsyncpa [#allocation9], 0
    %s13 = scalar_lea.sflag [#allocation9], 1
    %14 = vsyncpa %s13, 0
    loop: start=0, step=1, limit=4
    $region2: #{encoder_forward.1} parent=1 // loop_pre_header
      _
    $region3: #{encoder_forward.1} parent=1 // loop_header
      %s16 = sphi 0, %s20
      %p17 = scmp.ge.s32.totalorder %s16, 4
      %s26 = sphi 0, %s28
      %s29 = sphi 0, %s26
      %s30 = sphi 0, %s29
      %s46 = sphi 0, %s30
      %s50 = sphi 0, %s50
      %s52 = sphi 0, %s50
      %s53 = sphi 0, %s52
      %s67 = sphi 0, %s53
      %s71 = sphi 0, %s71
      %s73 = sphi 0, %s71
      %s74 = sphi 0, %s73
      %s88 = sphi 0, %s74
      %s92 = sphi 0, %s92
      %s94 = sphi 0, %s92
      %s95 = sphi 0, %s94
      %s109 = sphi 0, %s95
      %s113 = sphi 0, %s113
      %s115 = sphi 0, %s113
      %s116 = sphi 0, %s115
      %s130 = sphi 0, %s116
      %s134 = sphi 0, %s134
      %s136 = sphi 0, %s134
      %s137 = sphi 0, %s136
      %s151 = sphi 0, %s137
      %s155 = sphi 0, %s155
      %s157 = sphi 0, %s155
      %s158 = sphi 0, %s157
      %s172 = sphi 0, %s158
      %s178 = sphi 0, %s180
      %s181 = sphi 0, %s178
      %s182 = sphi 0, %s181
      %s198 = sphi 0, %s182
    $region4: #{encoder_forward.1} parent=1 // loop_header_branch
      %19 = sbr.rel (%p17) target = $region8
    $region5: #{encoder_forward.1} parent=1 // loop_body
      %s21 = ssub.s32 %s16, 1
      %s22 = ssub.s32 %s16, 2
      %s23 = sadd.s32 %s16, 1
      %s24 = ssub.s32 %s16, %s23
      %p25 = scmp.eq.s32.totalorder %s24, 0
      %s27 = sadd.s32 %s26, 1
      %s28 = scalar_select %p25, %s26, %s27
      %p31 = pneg %p25
      %p32 = scmp.eq.s32.totalorder %s16, 1
      %p33 = por %p31, %p32
      %p34 = scmp.ne.s32.totalorder %s26, %s29
      %p35 = scmp.eq.s32.totalorder %s16, 0
      %p36 = por %p34, %p35
      %p37 = scmp.ne.s32.totalorder %s26, %s29
      %p38 = scmp.eq.s32.totalorder %s21, 1
      %p39 = por %p37, %p38
      %p40 = scmp.ne.s32.totalorder %s29, %s30
      %p41 = scmp.eq.s32.totalorder %s21, 0
      %p42 = por %p40, %p41
      %p43 = scmp.ne.s32.totalorder %s29, %s30
      %p44 = scmp.eq.s32.totalorder %s22, 1
      %p45 = por %p43, %p44
      %p47 = scmp.ne.s32.totalorder %s30, %s46
      %p48 = scmp.eq.s32.totalorder %s22, 0
      %p49 = por %p47, %p48
      %s51 = sadd.s32 %s50, 1
      %p54 = scmp.eq.s32.totalorder %s16, 1
      %p55 = scmp.ne.s32.totalorder %s50, %s52
      %p56 = scmp.eq.s32.totalorder %s16, 0
      %p57 = por %p55, %p56
      %p58 = scmp.ne.s32.totalorder %s50, %s52
      %p59 = scmp.eq.s32.totalorder %s21, 1
      %p60 = por %p58, %p59
      %p61 = scmp.ne.s32.totalorder %s52, %s53
      %p62 = scmp.eq.s32.totalorder %s21, 0
      %p63 = por %p61, %p62
      %p64 = scmp.ne.s32.totalorder %s52, %s53
      %p65 = scmp.eq.s32.totalorder %s22, 1
      %p66 = por %p64, %p65
      %p68 = scmp.ne.s32.totalorder %s53, %s67
      %p69 = scmp.eq.s32.totalorder %s22, 0
      %p70 = por %p68, %p69
      %s72 = sadd.s32 %s71, 1
      %p75 = scmp.eq.s32.totalorder %s16, 1
      %p76 = scmp.ne.s32.totalorder %s71, %s73
      %p77 = scmp.eq.s32.totalorder %s16, 0
      %p78 = por %p76, %p77
      %p79 = scmp.ne.s32.totalorder %s71, %s73
      %p80 = scmp.eq.s32.totalorder %s21, 1
      %p81 = por %p79, %p80
      %p82 = scmp.ne.s32.totalorder %s73, %s74
      %p83 = scmp.eq.s32.totalorder %s21, 0
      %p84 = por %p82, %p83
      %p85 = scmp.ne.s32.totalorder %s73, %s74
      %p86 = scmp.eq.s32.totalorder %s22, 1
      %p87 = por %p85, %p86
      %p89 = scmp.ne.s32.totalorder %s74, %s88
      %p90 = scmp.eq.s32.totalorder %s22, 0
      %p91 = por %p89, %p90
      %s93 = sadd.s32 %s92, 1
      %p96 = scmp.eq.s32.totalorder %s16, 1
      %p97 = scmp.ne.s32.totalorder %s92, %s94
      %p98 = scmp.eq.s32.totalorder %s16, 0
      %p99 = por %p97, %p98
      %p100 = scmp.ne.s32.totalorder %s92, %s94
      %p101 = scmp.eq.s32.totalorder %s21, 1
      %p102 = por %p100, %p101
      %p103 = scmp.ne.s32.totalorder %s94, %s95
      %p104 = scmp.eq.s32.totalorder %s21, 0
      %p105 = por %p103, %p104
      %p106 = scmp.ne.s32.totalorder %s94, %s95
      %p107 = scmp.eq.s32.totalorder %s22, 1
      %p108 = por %p106, %p107
      %p110 = scmp.ne.s32.totalorder %s95, %s109
      %p111 = scmp.eq.s32.totalorder %s22, 0
      %p112 = por %p110, %p111
      %s114 = sadd.s32 %s113, 1
      %p117 = scmp.eq.s32.totalorder %s16, 1
      %p118 = scmp.ne.s32.totalorder %s113, %s115
      %p119 = scmp.eq.s32.totalorder %s16, 0
      %p120 = por %p118, %p119
      %p121 = scmp.ne.s32.totalorder %s113, %s115
      %p122 = scmp.eq.s32.totalorder %s21, 1
      %p123 = por %p121, %p122
      %p124 = scmp.ne.s32.totalorder %s115, %s116
      %p125 = scmp.eq.s32.totalorder %s21, 0
      %p126 = por %p124, %p125
      %p127 = scmp.ne.s32.totalorder %s115, %s116
      %p128 = scmp.eq.s32.totalorder %s22, 1
      %p129 = por %p127, %p128
      %p131 = scmp.ne.s32.totalorder %s116, %s130
      %p132 = scmp.eq.s32.totalorder %s22, 0
      %p133 = por %p131, %p132
      %s135 = sadd.s32 %s134, 1
      %p138 = scmp.eq.s32.totalorder %s16, 1
      %p139 = scmp.ne.s32.totalorder %s134, %s136
      %p140 = scmp.eq.s32.totalorder %s16, 0
      %p141 = por %p139, %p140
      %p142 = scmp.ne.s32.totalorder %s134, %s136
      %p143 = scmp.eq.s32.totalorder %s21, 1
      %p144 = por %p142, %p143
      %p145 = scmp.ne.s32.totalorder %s136, %s137
      %p146 = scmp.eq.s32.totalorder %s21, 0
      %p147 = por %p145, %p146
      %p148 = scmp.ne.s32.totalorder %s136, %s137
      %p149 = scmp.eq.s32.totalorder %s22, 1
      %p150 = por %p148, %p149
      %p152 = scmp.ne.s32.totalorder %s137, %s151
      %p153 = scmp.eq.s32.totalorder %s22, 0
      %p154 = por %p152, %p153
      %s156 = sadd.s32 %s155, 1
      %p159 = scmp.eq.s32.totalorder %s16, 1
      %p160 = scmp.ne.s32.totalorder %s155, %s157
      %p161 = scmp.eq.s32.totalorder %s16, 0
      %p162 = por %p160, %p161
      %p163 = scmp.ne.s32.totalorder %s155, %s157
      %p164 = scmp.eq.s32.totalorder %s21, 1
      %p165 = por %p163, %p164
      %p166 = scmp.ne.s32.totalorder %s157, %s158
      %p167 = scmp.eq.s32.totalorder %s21, 0
      %p168 = por %p166, %p167
      %p169 = scmp.ne.s32.totalorder %s157, %s158
      %p170 = scmp.eq.s32.totalorder %s22, 1
      %p171 = por %p169, %p170
      %p173 = scmp.ne.s32.totalorder %s158, %s172
      %p174 = scmp.eq.s32.totalorder %s22, 0
      %p175 = por %p173, %p174
      %s176 = ssub.s32 %s16, %s23
      %p177 = scmp.eq.s32.totalorder %s176, 0
      %s179 = sadd.s32 %s178, 1
      %s180 = scalar_select %p177, %s178, %s179
      %p183 = pneg %p177
      %p184 = scmp.eq.s32.totalorder %s16, 1
      %p185 = por %p183, %p184
      %p186 = scmp.ne.s32.totalorder %s178, %s181
      %p187 = scmp.eq.s32.totalorder %s16, 0
      %p188 = por %p186, %p187
      %p189 = scmp.ne.s32.totalorder %s178, %s181
      %p190 = scmp.eq.s32.totalorder %s21, 1
      %p191 = por %p189, %p190
      %p192 = scmp.ne.s32.totalorder %s181, %s182
      %p193 = scmp.eq.s32.totalorder %s21, 0
      %p194 = por %p192, %p193
      %p195 = scmp.ne.s32.totalorder %s181, %s182
      %p196 = scmp.eq.s32.totalorder %s22, 1
      %p197 = por %p195, %p196
      %p199 = scmp.ne.s32.totalorder %s182, %s198
      %p200 = scmp.eq.s32.totalorder %s22, 0
      %p201 = por %p199, %p200
      %p202 = scmp.le.s32.totalorder 1, %s16
      %p203 = scmp.lt.s32.totalorder %s16, 3
      %p204 = pnand %p202, %p203
      %p205 = pneg %p204
      // Predicated region
      $region9: #{encoder_forward.1} parent=5 // pred_check
        _
      $region10: #{encoder_forward.1} parent=5 // pred_check_branch
        %207 = sbr.rel (%p204) target = $region12
      $region11: #{encoder_forward.1} parent=5 // pred_region
        %s208 = ssub.s32 %s16, 1
        // Predicated region
        $region13: #{encoder_forward.1} parent=11 // pred_check
          %p209 = pneg %p63
        $region14: #{encoder_forward.1} parent=11 // pred_check_branch
          %211 = sbr.rel (%p209) target = $region16
        $region15: #{encoder_forward.1} parent=11 // pred_region
          _
        $region16: #{encoder_forward.1} parent=11 // pred_fallthru
          _
        // Predicated region
        $region17: #{encoder_forward.1} parent=11 // pred_check
          %p212 = pneg %p84
        $region18: #{encoder_forward.1} parent=11 // pred_check_branch
          %214 = sbr.rel (%p212) target = $region20
        $region19: #{encoder_forward.1} parent=11 // pred_region
          _
        $region20: #{encoder_forward.1} parent=11 // pred_fallthru
          _
        // Predicated region
        $region21: #{encoder_forward.1} parent=11 // pred_check
          %p215 = pneg %p105
        $region22: #{encoder_forward.1} parent=11 // pred_check_branch
          %217 = sbr.rel (%p215) target = $region24
        $region23: #{encoder_forward.1} parent=11 // pred_region
          _
        $region24: #{encoder_forward.1} parent=11 // pred_fallthru
          _
        // Predicated region
        $region25: #{encoder_forward.1} parent=11 // pred_check
          %p218 = pneg %p126
        $region26: #{encoder_forward.1} parent=11 // pred_check_branch
          %220 = sbr.rel (%p218) target = $region28
        $region27: #{encoder_forward.1} parent=11 // pred_region
          _
        $region28: #{encoder_forward.1} parent=11 // pred_fallthru
          _
        // Predicated region
        $region29: #{encoder_forward.1} parent=11 // pred_check
          %p221 = pneg %p147
        $region30: #{encoder_forward.1} parent=11 // pred_check_branch
          %223 = sbr.rel (%p221) target = $region32
        $region31: #{encoder_forward.1} parent=11 // pred_region
          _
        $region32: #{encoder_forward.1} parent=11 // pred_fallthru
          _
        // Predicated region
        $region33: #{encoder_forward.1} parent=11 // pred_check
          %p224 = pneg %p168
        $region34: #{encoder_forward.1} parent=11 // pred_check_branch
          %226 = sbr.rel (%p224) target = $region36
        $region35: #{encoder_forward.1} parent=11 // pred_region
          _
        $region36: #{encoder_forward.1} parent=11 // pred_fallthru
          _
      $region12: #{encoder_forward.1} parent=5 // pred_fallthru
        _
      %p227 = scmp.lt.s32.totalorder %s16, 2
      // Predicated region
      $region37: #{encoder_forward.1} parent=5 // pred_check
        %p228 = pneg %p227
      $region38: #{encoder_forward.1} parent=5 // pred_check_branch
        %230 = sbr.rel (%p228) target = $region40
      $region39: #{encoder_forward.1} parent=5 // pred_region
        // Predicated region
        $region41: #{encoder_forward.1} parent=39 // pred_check
          %p231 = pneg %p36
        $region42: #{encoder_forward.1} parent=39 // pred_check_branch
          %233 = sbr.rel (%p231) target = $region44
        $region43: #{encoder_forward.1} parent=39 // pred_region
          %s234 = smul.u32 8, %s16
          %p235 = scmp.lt.s32.totalorder %s234, 15
          %s236 = scalar_select %p235, %s234, 15
          %s237 = smul.addr %s236, 8
          %s238 = scalar_lea.vmem %s0, %s237
          %s239 = smul.u32 8, %s16
        $region44: #{encoder_forward.1} parent=39 // pred_fallthru
          _
      $region40: #{encoder_forward.1} parent=5 // pred_fallthru
        _
      %p240 = scmp.le.s32.totalorder 1, %s16
      %p241 = scmp.lt.s32.totalorder %s16, 3
      %p242 = pnand %p240, %p241
      %p243 = pneg %p242
      // Predicated region
      $region45: #{encoder_forward.1} parent=5 // pred_check
        _
      $region46: #{encoder_forward.1} parent=5 // pred_check_branch
        %245 = sbr.rel (%p242) target = $region48
      $region47: #{encoder_forward.1} parent=5 // pred_region
        %s246 = ssub.s32 %s16, 1
        %s247 = smul.u32 8, %s21
        %p248 = scmp.lt.s32.totalorder %s247, 15
        %s249 = scalar_select %p248, %s247, 15
        %s250 = smul.addr %s249, 8
        %s251 = scalar_lea.vmem %s0, %s250
        %p252 = pneg %p42
        %p253 = pneg %p39
        %p254 = pneg %p63
        %p255 = pneg %p60
        %p256 = pneg %p84
        %p257 = pneg %p81
        %p258 = pneg %p105
        %p259 = pneg %p102
        %p260 = pneg %p126
        %p261 = pneg %p123
        %p262 = pneg %p147
        %p263 = pneg %p144
        %p264 = pneg %p168
        %p265 = pneg %p165
        %p266 = pneg %p194
        %p267 = pneg %p191
        %s268 = sand.u32 %s181, 1
        %s269 = scalar_lea.sflag [#allocation9], %s268
        %s270 = sand.u32 %s181, 1
        %s271 = smul.addr %s270, 16
        %s272 = scalar_lea.vmem [#allocation8], %s271
        %s273 = smul.u32 8, %s21
        %p274 = scmp.lt.s32.totalorder %s273, 15
        %s275 = scalar_select %p274, %s273, 15
        %s276 = smul.addr %s275, 8
        %s277 = scalar_lea.vmem %s0, %s276
        %s278 = smul.u32 8, %s21
        %s279 = smul.u32 2, %s21
        %v280 = vld [vmem:[%s277] sm:$0xff]
        %v281 = vld [vmem:[%s277 + $0x8] sm:$0xff]
        %v282 = vld [vmem:[%s277 + $0x10] sm:$0xff]
        %v283 = vld [vmem:[%s277 + $0x18] sm:$0xff]
        %v284 = vld [vmem:[%s277 + $0x20] sm:$0xff]
        %v285 = vld [vmem:[%s277 + $0x28] sm:$0xff]
        %v286 = vld [vmem:[%s277 + $0x30] sm:$0xff]
        %v287 = vld [vmem:[%s277 + $0x38] sm:$0xff]
        %v288 = vld [vmem:[%s1] sm:$0xff]
        %v289 = vld [vmem:[%s1 + $0x8] sm:$0xff]
        %v290 = vld [vmem:[%s1 + $0x10] sm:$0xff]
        %v291 = vld [vmem:[%s1 + $0x18] sm:$0xff]
        %v292 = vld [vmem:[%s1 + $0x20] sm:$0xff]
        %v293 = vld [vmem:[%s1 + $0x28] sm:$0xff]
        %v294 = vld [vmem:[%s1 + $0x30] sm:$0xff]
        %v295 = vld [vmem:[%s1 + $0x38] sm:$0xff]
        %v296 = vld [vmem:[%s2] sm:$0x1]
        %v298 = vlaneseq
        %v299 = vshrl.u32 %v298, 7
        %v300 = vsub.s32 0, %v299
        %v301 = vrot.slane %v296, %v300
        %vm303 = vcmask 523264
        %v305 = vsel %vm303, %v280, 0
        %v308 = vsel %vm303, %v281, 0
        %v311 = vsel %vm303, %v282, 0
        %v314 = vsel %vm303, %v283, 0
        %v317 = vsel %vm303, %v284, 0
        %v320 = vsel %vm303, %v285, 0
        %v323 = vsel %vm303, %v286, 0
        %v326 = vsel %vm303, %v287, 0
        %328 = vmatprep.subr.mxu0 0.0
        %329 = vmatpush1.msra.mxu0 0.0
        %330 = vmatprep.subr.mxu0 0.0
        %331 = vmatpush1.msra.mxu0 0.0
        %332 = vmatprep.subr.mxu0 0.0
        %333 = vmatpush1.msra.mxu0 0.0
        %334 = vmatprep.subr.mxu0 0.0
        %335 = vmatpush1.msra.mxu0 0.0
        %336 = vmatprep.subr.mxu0 0.0
        %337 = vmatpush1.msra.mxu0 0.0
        %338 = vmatprep.subr.mxu0 0.0
        %339 = vmatpush1.msra.mxu0 0.0
        %340 = vmatprep.subr.mxu0 0.0
        %341 = vmatpush1.msra.mxu0 0.0
        %342 = vmatprep.subr.mxu0 0.0
        %343 = vmatpush1.msra.mxu0 0.0
        %344 = vmatprep.subr.mxu0 0.0
        %345 = vmatpush1.msra.mxu0 %v295
        %346 = vmatprep.subr.mxu0 0.0
        %347 = vmatpush1.msra.mxu0 %v294
        %348 = vmatprep.subr.mxu0 0.0
        %349 = vmatpush1.msra.mxu0 %v293
        %350 = vmatprep.subr.mxu0 0.0
        %351 = vmatpush1.msra.mxu0 %v292
        %352 = vmatprep.subr.mxu0 0.0
        %353 = vmatpush1.msra.mxu0 %v291
        %354 = vmatprep.subr.mxu0 0.0
        %355 = vmatpush1.msra.mxu0 %v290
        %356 = vmatprep.subr.mxu0 0.0
        %357 = vmatpush1.msra.mxu0 %v289
        %358 = vmatprep.subr.mxu0 0.0
        %359 = vmatpush1.msra.mxu0 %v288
        %360 = vmatprep.subr.mxu0 0.0
        %361 = vmatpush2.msra.mxu0 0.0
        %362 = vmatprep.subr.mxu0 0.0
        %363 = vmatpush2.msra.mxu0 0.0
        %364 = vmatprep.subr.mxu0 0.0
        %365 = vmatpush2.msra.mxu0 0.0
        %366 = vmatprep.subr.mxu0 0.0
        %367 = vmatpush2.msra.mxu0 0.0
        %368 = vmatprep.subr.mxu0 0.0
        %369 = vmatpush2.msra.mxu0 0.0
        %370 = vmatprep.subr.mxu0 0.0
        %371 = vmatpush2.msra.mxu0 0.0
        %372 = vmatprep.subr.mxu0 0.0
        %373 = vmatpush2.msra.mxu0 0.0
        %374 = vmatprep.subr.mxu0 0.0
        %375 = vmatpush2.msra.mxu0 0.0
        %376 = vmatprep.subr.mxu0 0.0
        %377 = vmatpush2.msra.mxu0 0.0
        %378 = vmatprep.subr.mxu0 0.0
        %379 = vmatpush2.msra.mxu0 0.0
        %380 = vmatprep.subr.mxu0 0.0
        %381 = vmatpush2.msra.mxu0 0.0
        %382 = vmatprep.subr.mxu0 0.0
        %383 = vmatpush2.msra.mxu0 0.0
        %384 = vmatprep.subr.mxu0 0.0
        %385 = vmatpush2.msra.mxu0 0.0
        %386 = vmatprep.subr.mxu0 0.0
        %387 = vmatpush2.msra.mxu0 0.0
        %388 = vmatprep.subr.mxu0 0.0
        %389 = vmatpush2.msra.mxu0 0.0
        %390 = vmatprep.subr.mxu0 0.0
        %391 = vmatpush2.msra.mxu0 0.0
        %392 = vmatprep.mubr.f32.mxu0 0.0
        %393 = vmatmul.mubr.f32.gmra.mxu0 %v305
        %v394 = vpop.f32.mrf.mxu0
        %v395 = vadd.f32 %v301, %v394
        %v396 = vpop.f32.mrf.mxu0
        %397 = vmatprep.mubr.f32.mxu0 0.0
        %398 = vmatmul.mubr.f32.gmra.mxu0 %v308
        %v399 = vpop.f32.mrf.mxu0
        %v400 = vadd.f32 %v301, %v399
        %v401 = vpop.f32.mrf.mxu0
        %402 = vmatprep.mubr.f32.mxu0 0.0
        %403 = vmatmul.mubr.f32.gmra.mxu0 %v311
        %v404 = vpop.f32.mrf.mxu0
        %v405 = vadd.f32 %v301, %v404
        %v406 = vpop.f32.mrf.mxu0
        %407 = vmatprep.mubr.f32.mxu0 0.0
        %408 = vmatmul.mubr.f32.gmra.mxu0 %v314
        %v409 = vpop.f32.mrf.mxu0
        %v410 = vadd.f32 %v301, %v409
        %v411 = vpop.f32.mrf.mxu0
        %412 = vmatprep.mubr.f32.mxu0 0.0
        %413 = vmatmul.mubr.f32.gmra.mxu0 %v317
        %v414 = vpop.f32.mrf.mxu0
        %v415 = vadd.f32 %v301, %v414
        %v416 = vpop.f32.mrf.mxu0
        %417 = vmatprep.mubr.f32.mxu0 0.0
        %418 = vmatmul.mubr.f32.gmra.mxu0 %v320
        %v419 = vpop.f32.mrf.mxu0
        %v420 = vadd.f32 %v301, %v419
        %v421 = vpop.f32.mrf.mxu0
        %422 = vmatprep.mubr.f32.mxu0 0.0
        %423 = vmatmul.mubr.f32.gmra.mxu0 %v323
        %v424 = vpop.f32.mrf.mxu0
        %v425 = vadd.f32 %v301, %v424
        %v426 = vpop.f32.mrf.mxu0
        %427 = vmatprep.mubr.f32.mxu0 0.0
        %428 = vmatmul.mubr.f32.gmra.mxu0 %v326
        %v429 = vpop.f32.mrf.mxu0
        %v430 = vadd.f32 %v301, %v429
        %v431 = vpop.f32.mrf.mxu0
        %432 = vdwg.mxu0
        %v433 = vmax.f32 %v395, 0.0
        %v434 = vmax.f32 %v400, 0.0
        %v435 = vmax.f32 %v405, 0.0
        %v436 = vmax.f32 %v410, 0.0
        %v437 = vmax.f32 %v415, 0.0
        %v438 = vmax.f32 %v420, 0.0
        %v439 = vmax.f32 %v425, 0.0
        %v440 = vmax.f32 %v430, 0.0
        %vm441 = vcmask 261120
        %442 = vst.msk [vmem:[#allocation2] sm:$0xff] %vm441, %v433
        %443 = vst.msk [vmem:[#allocation2 + $0x8] sm:$0xff] %vm441, %v434
        %444 = vst.msk [vmem:[#allocation2 + $0x10] sm:$0xff] %vm441, %v435
        %445 = vst.msk [vmem:[#allocation2 + $0x18] sm:$0xff] %vm441, %v436
        %446 = vst.msk [vmem:[#allocation2 + $0x20] sm:$0xff] %vm441, %v437
        %447 = vst.msk [vmem:[#allocation2 + $0x28] sm:$0xff] %vm441, %v438
        %448 = vst.msk [vmem:[#allocation2 + $0x30] sm:$0xff] %vm441, %v439
        %449 = vst.msk [vmem:[#allocation2 + $0x38] sm:$0xff] %vm441, %v440
        %450 = vst [vmem:[#allocation3] sm:$0x1f] 0.0
        %451 = vst [vmem:[#allocation3 + $0x8] sm:$0x1f] 0.0
        %452 = vst [vmem:[#allocation3 + $0x10] sm:$0x1f] 0.0
        %453 = vst [vmem:[#allocation3 + $0x18] sm:$0x1f] 0.0
        %454 = vst [vmem:[#allocation3 + $0x20] sm:$0x1f] 0.0
        %vm455 = vcmask 521216
        %456 = vst.msk [vmem:[#allocation6] sm:$0x3f] %vm455, 0.0
        %457 = vst.msk [vmem:[#allocation6 + $0x8] sm:$0x3f] %vm455, 0.0
        %458 = vst.msk [vmem:[#allocation6 + $0x10] sm:$0x3f] %vm455, 0.0
        %459 = vst.msk [vmem:[#allocation6 + $0x18] sm:$0x3f] %vm455, 0.0
        %460 = vst.msk [vmem:[#allocation6 + $0x20] sm:$0x3f] %vm455, 0.0
        %461 = vst.msk [vmem:[#allocation6 + $0x28] sm:$0x3f] %vm455, 0.0
        %v462 = vld [vmem:[#allocation2] sm:$0xf]
        %464 = vrot.lane.b32.xlu0 %v462, 96
        %v465 = vpop.permute.xlu0 %464
        %vm467 = vcmask 1044224
        %468 = vst.msk [vmem:[#allocation3] sm:$0xf] %vm467, %v465
        %v469 = vld [vmem:[#allocation2 + $0x4] sm:$0xf]
        %471 = vrot.lane.b32.xlu0 %v469, 96
        %v472 = vpop.permute.xlu0 %471
        %s474 = scalar_lea.vmem [#allocation3], 8
        %475 = vst.msk [vmem:[%s474] sm:$0xf] %vm467, %v472
        %v476 = vld [vmem:[#allocation2 + $0x8] sm:$0xf]
        %478 = vrot.lane.b32.xlu0 %v476, 96
        %v479 = vpop.permute.xlu0 %478
        %s481 = scalar_lea.vmem [#allocation3], 16
        %482 = vst.msk [vmem:[%s481] sm:$0xf] %vm467, %v479
        %v483 = vld [vmem:[#allocation2 + $0xc] sm:$0xf]
        %485 = vrot.lane.b32.xlu0 %v483, 96
        %v486 = vpop.permute.xlu0 %485
        %s488 = scalar_lea.vmem [#allocation3], 24
        %489 = vst.msk [vmem:[%s488] sm:$0xf] %vm467, %v486
        %v490 = vld [vmem:[#allocation2 + $0x10] sm:$0xf]
        %492 = vrot.lane.b32.xlu0 %v490, 64
        %v493 = vpop.permute.xlu0 %492
        %vm495 = vcmask 781824
        %496 = vst.msk [vmem:[#allocation3 + $0x1] sm:$0xf] %vm495, %v493
        %v497 = vld [vmem:[#allocation2 + $0x14] sm:$0xf]
        %499 = vrot.lane.b32.xlu0 %v497, 64
        %v500 = vpop.permute.xlu0 %499
        %502 = vst.msk [vmem:[%s474 + $0x1] sm:$0xf] %vm495, %v500
        %v503 = vld [vmem:[#allocation2 + $0x18] sm:$0xf]
        %505 = vrot.lane.b32.xlu0 %v503, 64
        %v506 = vpop.permute.xlu0 %505
        %508 = vst.msk [vmem:[%s481 + $0x1] sm:$0xf] %vm495, %v506
        %v509 = vld [vmem:[#allocation2 + $0x1c] sm:$0xf]
        %511 = vrot.lane.b32.xlu0 %v509, 64
        %v512 = vpop.permute.xlu0 %511
        %514 = vst.msk [vmem:[%s488 + $0x1] sm:$0xf] %vm495, %v512
        %v515 = vld [vmem:[#allocation2 + $0x20] sm:$0xf]
        %517 = vrot.lane.b32.xlu0 %v515, 32
        %v518 = vpop.permute.xlu0 %517
        %vm520 = vcmask 519424
        %521 = vst.msk [vmem:[%s474] sm:$0xf] %vm520, %v518
        %v522 = vld [vmem:[#allocation2 + $0x24] sm:$0xf]
        %524 = vrot.lane.b32.xlu0 %v522, 32
        %v525 = vpop.permute.xlu0 %524
        %527 = vst.msk [vmem:[%s481] sm:$0xf] %vm520, %v525
        %v528 = vld [vmem:[#allocation2 + $0x28] sm:$0xf]
        %530 = vrot.lane.b32.xlu0 %v528, 32
        %v531 = vpop.permute.xlu0 %530
        %533 = vst.msk [vmem:[%s488] sm:$0xf] %vm520, %v531
        %v534 = vld [vmem:[#allocation2 + $0x2c] sm:$0xf]
        %536 = vrot.lane.b32.xlu0 %v534, 32
        %v537 = vpop.permute.xlu0 %536
        %s539 = scalar_lea.vmem [#allocation3], 32
        %540 = vst.msk [vmem:[%s539] sm:$0xf] %vm520, %v537
        %v541 = vld [vmem:[#allocation2 + $0x30] sm:$0xf]
        %vm542 = vcmask 257024
        %543 = vst.msk [vmem:[%s474 + $0x1] sm:$0xf] %vm542, %v541
        %v544 = vld [vmem:[#allocation2 + $0x34] sm:$0xf]
        %545 = vst.msk [vmem:[%s481 + $0x1] sm:$0xf] %vm542, %v544
        %v546 = vld [vmem:[#allocation2 + $0x38] sm:$0xf]
        %547 = vst.msk [vmem:[%s488 + $0x1] sm:$0xf] %vm542, %v546
        %v548 = vld [vmem:[#allocation2 + $0x3c] sm:$0xf]
        %549 = vst.msk [vmem:[%s539 + $0x1] sm:$0xf] %vm542, %v548
        %v550 = vld [vmem:[#allocation3] sm:$0xf]
        %551 = vst [vmem:[#allocation4] sm:$0xf] %v550
        %v552 = vld [vmem:[%s474] sm:$0xf]
        %v554 = vrot.slane %v552, 4
        %556 = vst [vmem:[#allocation4] sm:$0xf0] %v554
        %v557 = vld [vmem:[%s481] sm:$0xf]
        %558 = vst [vmem:[#allocation4 + $0x20] sm:$0xf] %v557
        %v559 = vld [vmem:[%s488] sm:$0xf]
        %v561 = vrot.slane %v559, 4
        %563 = vst [vmem:[#allocation4 + $0x20] sm:$0xf0] %v561
        %v564 = vld [vmem:[#allocation3 + $0x1] sm:$0xf]
        %565 = vst [vmem:[#allocation4 + $0x8] sm:$0xf] %v564
        %v566 = vld [vmem:[%s474 + $0x1] sm:$0xf]
        %v568 = vrot.slane %v566, 4
        %570 = vst [vmem:[#allocation4 + $0x8] sm:$0xf0] %v568
        %v571 = vld [vmem:[%s481 + $0x1] sm:$0xf]
        %572 = vst [vmem:[#allocation4 + $0x28] sm:$0xf] %v571
        %v573 = vld [vmem:[%s488 + $0x1] sm:$0xf]
        %v575 = vrot.slane %v573, 4
        %577 = vst [vmem:[#allocation4 + $0x28] sm:$0xf0] %v575
        %v578 = vld [vmem:[%s474] sm:$0xf]
        %579 = vst [vmem:[#allocation4 + $0x10] sm:$0xf] %v578
        %v580 = vld [vmem:[%s481] sm:$0xf]
        %v582 = vrot.slane %v580, 4
        %584 = vst [vmem:[#allocation4 + $0x10] sm:$0xf0] %v582
        %v585 = vld [vmem:[%s488] sm:$0xf]
        %586 = vst [vmem:[#allocation4 + $0x30] sm:$0xf] %v585
        %v587 = vld [vmem:[%s539] sm:$0xf]
        %v589 = vrot.slane %v587, 4
        %591 = vst [vmem:[#allocation4 + $0x30] sm:$0xf0] %v589
        %v592 = vld [vmem:[%s474 + $0x1] sm:$0xf]
        %593 = vst [vmem:[#allocation4 + $0x18] sm:$0xf] %v592
        %v594 = vld [vmem:[%s481 + $0x1] sm:$0xf]
        %v596 = vrot.slane %v594, 4
        %598 = vst [vmem:[#allocation4 + $0x18] sm:$0xf0] %v596
        %v599 = vld [vmem:[%s488 + $0x1] sm:$0xf]
        %600 = vst [vmem:[#allocation4 + $0x38] sm:$0xf] %v599
        %v601 = vld [vmem:[%s539 + $0x1] sm:$0xf]
        %v603 = vrot.slane %v601, 4
        %605 = vst [vmem:[#allocation4 + $0x38] sm:$0xf0] %v603
        %v606 = vld [vmem:[#allocation4] sm:$0xff]
        %v607 = vld [vmem:[#allocation4 + $0x8] sm:$0xff]
        %v608 = vld [vmem:[#allocation4 + $0x10] sm:$0xff]
        %v609 = vld [vmem:[#allocation4 + $0x18] sm:$0xff]
        %v610 = vld [vmem:[#allocation4 + $0x20] sm:$0xff]
        %v611 = vld [vmem:[#allocation4 + $0x28] sm:$0xff]
        %v612 = vld [vmem:[#allocation4 + $0x30] sm:$0xff]
        %v613 = vld [vmem:[#allocation4 + $0x38] sm:$0xff]
        %v614 = vld [vmem:[%s3] sm:$0xff]
        %v615 = vld [vmem:[%s3 + $0x8] sm:$0xff]
        %v616 = vld [vmem:[%s3 + $0x10] sm:$0xff]
        %v617 = vld [vmem:[%s3 + $0x18] sm:$0xff]
        %v618 = vld [vmem:[%s3 + $0x20] sm:$0xff]
        %v619 = vld [vmem:[%s3 + $0x28] sm:$0xff]
        %v620 = vld [vmem:[%s3 + $0x30] sm:$0xff]
        %v621 = vld [vmem:[%s3 + $0x38] sm:$0xff]
        %v622 = vld [vmem:[%s3 + $0x40] sm:$0xff]
        %v623 = vld [vmem:[%s3 + $0x48] sm:$0xff]
        %v624 = vld [vmem:[%s3 + $0x50] sm:$0xff]
        %v625 = vld [vmem:[%s3 + $0x58] sm:$0xff]
        %v626 = vld [vmem:[%s3 + $0x60] sm:$0xff]
        %v627 = vld [vmem:[%s3 + $0x68] sm:$0xff]
        %v628 = vld [vmem:[%s3 + $0x70] sm:$0xff]
        %v629 = vld [vmem:[%s3 + $0x78] sm:$0xff]
        %v630 = vld [vmem:[%s3 + $0x80] sm:$0xff]
        %v631 = vld [vmem:[%s3 + $0x88] sm:$0xff]
        %v632 = vld [vmem:[%s3 + $0x90] sm:$0xff]
        %v633 = vld [vmem:[%s3 + $0x98] sm:$0xff]
        %v634 = vld [vmem:[%s3 + $0xa0] sm:$0xff]
        %v635 = vld [vmem:[%s3 + $0xa8] sm:$0xff]
        %v636 = vld [vmem:[%s3 + $0xb0] sm:$0xff]
        %v637 = vld [vmem:[%s3 + $0xb8] sm:$0xff]
        %v638 = vld [vmem:[%s3 + $0xc0] sm:$0xff]
        %v639 = vld [vmem:[%s3 + $0xc8] sm:$0xff]
        %v640 = vld [vmem:[%s3 + $0xd0] sm:$0xff]
        %v641 = vld [vmem:[%s3 + $0xd8] sm:$0xff]
        %v642 = vld [vmem:[%s3 + $0xe0] sm:$0xff]
        %v643 = vld [vmem:[%s3 + $0xe8] sm:$0xff]
        %v644 = vld [vmem:[%s3 + $0xf0] sm:$0xff]
        %v645 = vld [vmem:[%s3 + $0xf8] sm:$0xff]
        %v646 = vld [vmem:[%s3 + $0x100] sm:$0xff]
        %v647 = vld [vmem:[%s3 + $0x108] sm:$0xff]
        %v648 = vld [vmem:[%s3 + $0x110] sm:$0xff]
        %v649 = vld [vmem:[%s3 + $0x118] sm:$0xff]
        %v650 = vld [vmem:[%s3 + $0x120] sm:$0xff]
        %v651 = vld [vmem:[%s3 + $0x128] sm:$0xff]
        %v652 = vld [vmem:[%s3 + $0x130] sm:$0xff]
        %v653 = vld [vmem:[%s3 + $0x138] sm:$0xff]
        %v654 = vld [vmem:[%s3 + $0x140] sm:$0xff]
        %v655 = vld [vmem:[%s3 + $0x148] sm:$0xff]
        %v656 = vld [vmem:[%s3 + $0x150] sm:$0xff]
        %v657 = vld [vmem:[%s3 + $0x158] sm:$0xff]
        %v658 = vld [vmem:[%s3 + $0x160] sm:$0xff]
        %v659 = vld [vmem:[%s3 + $0x168] sm:$0xff]
        %v660 = vld [vmem:[%s3 + $0x170] sm:$0xff]
        %v661 = vld [vmem:[%s3 + $0x178] sm:$0xff]
        %v662 = vld [vmem:[%s3 + $0x180] sm:$0xff]
        %v663 = vld [vmem:[%s3 + $0x188] sm:$0xff]
        %v664 = vld [vmem:[%s3 + $0x190] sm:$0xff]
        %v665 = vld [vmem:[%s3 + $0x198] sm:$0xff]
        %v666 = vld [vmem:[%s3 + $0x1a0] sm:$0xff]
        %v667 = vld [vmem:[%s3 + $0x1a8] sm:$0xff]
        %v668 = vld [vmem:[%s3 + $0x1b0] sm:$0xff]
        %v669 = vld [vmem:[%s3 + $0x1b8] sm:$0xff]
        %v670 = vld [vmem:[%s3 + $0x1c0] sm:$0xff]
        %v671 = vld [vmem:[%s3 + $0x1c8] sm:$0xff]
        %v672 = vld [vmem:[%s3 + $0x1d0] sm:$0xff]
        %v673 = vld [vmem:[%s3 + $0x1d8] sm:$0xff]
        %v674 = vld [vmem:[%s3 + $0x1e0] sm:$0xff]
        %v675 = vld [vmem:[%s3 + $0x1e8] sm:$0xff]
        %v676 = vld [vmem:[%s3 + $0x1f0] sm:$0xff]
        %v677 = vld [vmem:[%s3 + $0x1f8] sm:$0xff]
        %v678 = vld [vmem:[%s4] sm:$0x1]
        %v680 = vlaneseq
        %v681 = vshrl.u32 %v680, 7
        %v682 = vsub.s32 0, %v681
        %v683 = vrot.slane %v678, %v682
        %685 = vmatprep.subr.mxu0 0.0
        %686 = vmatpush1.msra.mxu0 %v629
        %687 = vmatprep.subr.mxu0 0.0
        %688 = vmatpush1.msra.mxu0 %v628
        %689 = vmatprep.subr.mxu0 0.0
        %690 = vmatpush1.msra.mxu0 %v627
        %691 = vmatprep.subr.mxu0 0.0
        %692 = vmatpush1.msra.mxu0 %v626
        %693 = vmatprep.subr.mxu0 0.0
        %694 = vmatpush1.msra.mxu0 %v625
        %695 = vmatprep.subr.mxu0 0.0
        %696 = vmatpush1.msra.mxu0 %v624
        %697 = vmatprep.subr.mxu0 0.0
        %698 = vmatpush1.msra.mxu0 %v623
        %699 = vmatprep.subr.mxu0 0.0
        %700 = vmatpush1.msra.mxu0 %v622
        %701 = vmatprep.subr.mxu0 0.0
        %702 = vmatpush1.msra.mxu0 %v621
        %703 = vmatprep.subr.mxu0 0.0
        %704 = vmatpush1.msra.mxu0 %v620
        %705 = vmatprep.subr.mxu0 0.0
        %706 = vmatpush1.msra.mxu0 %v619
        %707 = vmatprep.subr.mxu0 0.0
        %708 = vmatpush1.msra.mxu0 %v618
        %709 = vmatprep.subr.mxu0 0.0
        %710 = vmatpush1.msra.mxu0 %v617
        %711 = vmatprep.subr.mxu0 0.0
        %712 = vmatpush1.msra.mxu0 %v616
        %713 = vmatprep.subr.mxu0 0.0
        %714 = vmatpush1.msra.mxu0 %v615
        %715 = vmatprep.subr.mxu0 0.0
        %716 = vmatpush1.msra.mxu0 %v614
        %717 = vmatprep.subr.mxu0 0.0
        %718 = vmatpush2.msra.mxu0 %v645
        %719 = vmatprep.subr.mxu0 0.0
        %720 = vmatpush2.msra.mxu0 %v644
        %721 = vmatprep.subr.mxu0 0.0
        %722 = vmatpush2.msra.mxu0 %v643
        %723 = vmatprep.subr.mxu0 0.0
        %724 = vmatpush2.msra.mxu0 %v642
        %725 = vmatprep.subr.mxu0 0.0
        %726 = vmatpush2.msra.mxu0 %v641
        %727 = vmatprep.subr.mxu0 0.0
        %728 = vmatpush2.msra.mxu0 %v640
        %729 = vmatprep.subr.mxu0 0.0
        %730 = vmatpush2.msra.mxu0 %v639
        %731 = vmatprep.subr.mxu0 0.0
        %732 = vmatpush2.msra.mxu0 %v638
        %733 = vmatprep.subr.mxu0 0.0
        %734 = vmatpush2.msra.mxu0 %v637
        %735 = vmatprep.subr.mxu0 0.0
        %736 = vmatpush2.msra.mxu0 %v636
        %737 = vmatprep.subr.mxu0 0.0
        %738 = vmatpush2.msra.mxu0 %v635
        %739 = vmatprep.subr.mxu0 0.0
        %740 = vmatpush2.msra.mxu0 %v634
        %741 = vmatprep.subr.mxu0 0.0
        %742 = vmatpush2.msra.mxu0 %v633
        %743 = vmatprep.subr.mxu0 0.0
        %744 = vmatpush2.msra.mxu0 %v632
        %745 = vmatprep.subr.mxu0 0.0
        %746 = vmatpush2.msra.mxu0 %v631
        %747 = vmatprep.subr.mxu0 0.0
        %748 = vmatpush2.msra.mxu0 %v630
        %749 = vmatprep.mubr.f32.mxu0 %v607
        %750 = vmatmul.mubr.f32.gmra.mxu0 %v606
        %v751 = vpop.f32.mrf.mxu0
        %v752 = vadd.f32 %v683, %v751
        %v753 = vpop.f32.mrf.mxu0
        %754 = vmatprep.mubr.f32.mxu0 %v611
        %755 = vmatmul.mubr.f32.gmra.mxu0 %v610
        %v756 = vpop.f32.mrf.mxu0
        %v757 = vadd.f32 %v683, %v756
        %v758 = vpop.f32.mrf.mxu0
        %759 = vdwg.mxu0
        %760 = vmatprep.subr.mxu0 0.0
        %761 = vmatpush1.msra.mxu0 %v661
        %762 = vmatprep.subr.mxu0 0.0
        %763 = vmatpush1.msra.mxu0 %v660
        %764 = vmatprep.subr.mxu0 0.0
        %765 = vmatpush1.msra.mxu0 %v659
        %766 = vmatprep.subr.mxu0 0.0
        %767 = vmatpush1.msra.mxu0 %v658
        %768 = vmatprep.subr.mxu0 0.0
        %769 = vmatpush1.msra.mxu0 %v657
        %770 = vmatprep.subr.mxu0 0.0
        %771 = vmatpush1.msra.mxu0 %v656
        %772 = vmatprep.subr.mxu0 0.0
        %773 = vmatpush1.msra.mxu0 %v655
        %774 = vmatprep.subr.mxu0 0.0
        %775 = vmatpush1.msra.mxu0 %v654
        %776 = vmatprep.subr.mxu0 0.0
        %777 = vmatpush1.msra.mxu0 %v653
        %778 = vmatprep.subr.mxu0 0.0
        %779 = vmatpush1.msra.mxu0 %v652
        %780 = vmatprep.subr.mxu0 0.0
        %781 = vmatpush1.msra.mxu0 %v651
        %782 = vmatprep.subr.mxu0 0.0
        %783 = vmatpush1.msra.mxu0 %v650
        %784 = vmatprep.subr.mxu0 0.0
        %785 = vmatpush1.msra.mxu0 %v649
        %786 = vmatprep.subr.mxu0 0.0
        %787 = vmatpush1.msra.mxu0 %v648
        %788 = vmatprep.subr.mxu0 0.0
        %789 = vmatpush1.msra.mxu0 %v647
        %790 = vmatprep.subr.mxu0 0.0
        %791 = vmatpush1.msra.mxu0 %v646
        %792 = vmatprep.subr.mxu0 0.0
        %793 = vmatpush2.msra.mxu0 %v677
        %794 = vmatprep.subr.mxu0 0.0
        %795 = vmatpush2.msra.mxu0 %v676
        %796 = vmatprep.subr.mxu0 0.0
        %797 = vmatpush2.msra.mxu0 %v675
        %798 = vmatprep.subr.mxu0 0.0
        %799 = vmatpush2.msra.mxu0 %v674
        %800 = vmatprep.subr.mxu0 0.0
        %801 = vmatpush2.msra.mxu0 %v673
        %802 = vmatprep.subr.mxu0 0.0
        %803 = vmatpush2.msra.mxu0 %v672
        %804 = vmatprep.subr.mxu0 0.0
        %805 = vmatpush2.msra.mxu0 %v671
        %806 = vmatprep.subr.mxu0 0.0
        %807 = vmatpush2.msra.mxu0 %v670
        %808 = vmatprep.subr.mxu0 0.0
        %809 = vmatpush2.msra.mxu0 %v669
        %810 = vmatprep.subr.mxu0 0.0
        %811 = vmatpush2.msra.mxu0 %v668
        %812 = vmatprep.subr.mxu0 0.0
        %813 = vmatpush2.msra.mxu0 %v667
        %814 = vmatprep.subr.mxu0 0.0
        %815 = vmatpush2.msra.mxu0 %v666
        %816 = vmatprep.subr.mxu0 0.0
        %817 = vmatpush2.msra.mxu0 %v665
        %818 = vmatprep.subr.mxu0 0.0
        %819 = vmatpush2.msra.mxu0 %v664
        %820 = vmatprep.subr.mxu0 0.0
        %821 = vmatpush2.msra.mxu0 %v663
        %822 = vmatprep.subr.mxu0 0.0
        %823 = vmatpush2.msra.mxu0 %v662
        %824 = vmatprep.mubr.f32.mxu0 %v609
        %825 = vmatmul.mubr.f32.gmra.mxu0 %v608
        %v826 = vpop.f32.mrf.mxu0
        %v827 = vadd.f32 %v752, %v826
        %v828 = vpop.f32.mrf.mxu0
        %829 = vmatprep.mubr.f32.mxu0 %v613
        %830 = vmatmul.mubr.f32.gmra.mxu0 %v612
        %v831 = vpop.f32.mrf.mxu0
        %v832 = vadd.f32 %v757, %v831
        %v833 = vpop.f32.mrf.mxu0
        %834 = vdwg.mxu0
        %v835 = vmax.f32 %v827, 0.0
        %v836 = vmax.f32 %v832, 0.0
        %837 = vst.msk [vmem:[#allocation5] sm:$0xff] %vm303, %v835
        %838 = vst.msk [vmem:[#allocation5 + $0x8] sm:$0xff] %vm303, %v836
        %v839 = vld [vmem:[#allocation5] sm:$0xf]
        %s840 = scalar_lea.vmem [#allocation6], 8
        %vm841 = vcmask 519168
        %842 = vst.msk [vmem:[%s840 + $0x1] sm:$0xf] %vm841, %v839
        %v843 = vld [vmem:[#allocation5 + $0x4] sm:$0xf]
        %s844 = scalar_lea.vmem [#allocation6], 16
        %845 = vst.msk [vmem:[%s844 + $0x1] sm:$0xf] %vm841, %v843
        %v846 = vld [vmem:[#allocation5 + $0x8] sm:$0xf]
        %s847 = scalar_lea.vmem [#allocation6], 24
        %848 = vst.msk [vmem:[%s847 + $0x1] sm:$0xf] %vm841, %v846
        %v849 = vld [vmem:[#allocation5 + $0xc] sm:$0xf]
        %s850 = scalar_lea.vmem [#allocation6], 32
        %851 = vst.msk [vmem:[%s850 + $0x1] sm:$0xf] %vm841, %v849
        %v852 = vld [vmem:[#allocation6] sm:$0xf]
        %853 = vst.msk [vmem:[#allocation7] sm:$0xf] %vm841, %v852
        %v854 = vld [vmem:[%s840] sm:$0xf]
        %v856 = vrot.slane %v854, 4
        %vm858 = vcmask 523268
        %859 = vst.msk [vmem:[#allocation7] sm:$0xf0] %vm858, %v856
        %v860 = vld [vmem:[%s844] sm:$0xf]
        %861 = vst.msk [vmem:[#allocation7 + $0x28] sm:$0xf] %vm841, %v860
        %v862 = vld [vmem:[%s847] sm:$0xf]
        %v864 = vrot.slane %v862, 4
        %866 = vst.msk [vmem:[#allocation7 + $0x28] sm:$0xf0] %vm858, %v864
        %v867 = vld [vmem:[#allocation6 + $0x1] sm:$0xf]
        %869 = vrot.lane.b32.xlu0 %v867, 64
        %v870 = vpop.permute.xlu0 %869
        %vm872 = vcmask 1043968
        %873 = vst.msk [vmem:[#allocation7] sm:$0xf] %vm872, %v870
        %v874 = vld [vmem:[%s840 + $0x1] sm:$0xf]
        %v876 = vrot.slane %v874, 4
        %877 = vrot.lane.b32.xlu0 %v876, 64
        %v878 = vpop.permute.xlu0 %877
        %vm880 = vcmask 1048068
        %881 = vst.msk [vmem:[#allocation7] sm:$0xf0] %vm880, %v878
        %v882 = vld [vmem:[%s844 + $0x1] sm:$0xf]
        %884 = vrot.lane.b32.xlu0 %v882, 64
        %v885 = vpop.permute.xlu0 %884
        %887 = vst.msk [vmem:[#allocation7 + $0x28] sm:$0xf] %vm872, %v885
        %v888 = vld [vmem:[%s847 + $0x1] sm:$0xf]
        %v890 = vrot.slane %v888, 4
        %891 = vrot.lane.b32.xlu0 %v890, 64
        %v892 = vpop.permute.xlu0 %891
        %894 = vst.msk [vmem:[#allocation7 + $0x28] sm:$0xf0] %vm880, %v892
        %v895 = vld [vmem:[#allocation6 + $0x2] sm:$0xf]
        %896 = vst.msk [vmem:[#allocation7 + $0x8] sm:$0xf] %vm841, %v895
        %v897 = vld [vmem:[%s840 + $0x2] sm:$0xf]
        %v899 = vrot.slane %v897, 4
        %901 = vst.msk [vmem:[#allocation7 + $0x8] sm:$0xf0] %vm858, %v899
        %v902 = vld [vmem:[%s844 + $0x2] sm:$0xf]
        %903 = vst.msk [vmem:[#allocation7 + $0x30] sm:$0xf] %vm841, %v902
        %v904 = vld [vmem:[%s847 + $0x2] sm:$0xf]
        %v906 = vrot.slane %v904, 4
        %908 = vst.msk [vmem:[#allocation7 + $0x30] sm:$0xf0] %vm858, %v906
        %v909 = vld [vmem:[%s840] sm:$0xf]
        %911 = vrot.lane.b32.xlu0 %v909, 64
        %v912 = vpop.permute.xlu0 %911
        %914 = vst.msk [vmem:[#allocation7 + $0x8] sm:$0xf] %vm872, %v912
        %v915 = vld [vmem:[%s844] sm:$0xf]
        %v917 = vrot.slane %v915, 4
        %918 = vrot.lane.b32.xlu0 %v917, 64
        %v919 = vpop.permute.xlu0 %918
        %921 = vst.msk [vmem:[#allocation7 + $0x8] sm:$0xf0] %vm880, %v919
        %v922 = vld [vmem:[%s847] sm:$0xf]
        %924 = vrot.lane.b32.xlu0 %v922, 64
        %v925 = vpop.permute.xlu0 %924
        %927 = vst.msk [vmem:[#allocation7 + $0x30] sm:$0xf] %vm872, %v925
        %v928 = vld [vmem:[%s850] sm:$0xf]
        %v930 = vrot.slane %v928, 4
        %931 = vrot.lane.b32.xlu0 %v930, 64
        %v932 = vpop.permute.xlu0 %931
        %934 = vst.msk [vmem:[#allocation7 + $0x30] sm:$0xf0] %vm880, %v932
        %v935 = vld [vmem:[%s840 + $0x1] sm:$0xf]
        %936 = vst.msk [vmem:[#allocation7 + $0x10] sm:$0xf] %vm841, %v935
        %v937 = vld [vmem:[%s844 + $0x1] sm:$0xf]
        %v939 = vrot.slane %v937, 4
        %941 = vst.msk [vmem:[#allocation7 + $0x10] sm:$0xf0] %vm858, %v939
        %v942 = vld [vmem:[%s847 + $0x1] sm:$0xf]
        %943 = vst.msk [vmem:[#allocation7 + $0x38] sm:$0xf] %vm841, %v942
        %v944 = vld [vmem:[%s850 + $0x1] sm:$0xf]
        %v946 = vrot.slane %v944, 4
        %948 = vst.msk [vmem:[#allocation7 + $0x38] sm:$0xf0] %vm858, %v946
        %v949 = vld [vmem:[%s840 + $0x2] sm:$0xf]
        %951 = vrot.lane.b32.xlu0 %v949, 64
        %v952 = vpop.permute.xlu0 %951
        %954 = vst.msk [vmem:[#allocation7 + $0x10] sm:$0xf] %vm872, %v952
        %v955 = vld [vmem:[%s844 + $0x2] sm:$0xf]
        %v957 = vrot.slane %v955, 4
        %958 = vrot.lane.b32.xlu0 %v957, 64
        %v959 = vpop.permute.xlu0 %958
        %961 = vst.msk [vmem:[#allocation7 + $0x10] sm:$0xf0] %vm880, %v959
        %v962 = vld [vmem:[%s847 + $0x2] sm:$0xf]
        %964 = vrot.lane.b32.xlu0 %v962, 64
        %v965 = vpop.permute.xlu0 %964
        %967 = vst.msk [vmem:[#allocation7 + $0x38] sm:$0xf] %vm872, %v965
        %v968 = vld [vmem:[%s850 + $0x2] sm:$0xf]
        %v970 = vrot.slane %v968, 4
        %971 = vrot.lane.b32.xlu0 %v970, 64
        %v972 = vpop.permute.xlu0 %971
        %974 = vst.msk [vmem:[#allocation7 + $0x38] sm:$0xf0] %vm880, %v972
        %v975 = vld [vmem:[%s844] sm:$0xf]
        %976 = vst.msk [vmem:[#allocation7 + $0x18] sm:$0xf] %vm841, %v975
        %v977 = vld [vmem:[%s847] sm:$0xf]
        %v979 = vrot.slane %v977, 4
        %981 = vst.msk [vmem:[#allocation7 + $0x18] sm:$0xf0] %vm858, %v979
        %v982 = vld [vmem:[%s850] sm:$0xf]
        %983 = vst.msk [vmem:[#allocation7 + $0x40] sm:$0xf] %vm841, %v982
        %s984 = scalar_lea.vmem [#allocation6], 40
        %v985 = vld [vmem:[%s984] sm:$0xf]
        %v987 = vrot.slane %v985, 4
        %989 = vst.msk [vmem:[#allocation7 + $0x40] sm:$0xf0] %vm858, %v987
        %v990 = vld [vmem:[%s844 + $0x1] sm:$0xf]
        %992 = vrot.lane.b32.xlu0 %v990, 64
        %v993 = vpop.permute.xlu0 %992
        %995 = vst.msk [vmem:[#allocation7 + $0x18] sm:$0xf] %vm872, %v993
        %v996 = vld [vmem:[%s847 + $0x1] sm:$0xf]
        %v998 = vrot.slane %v996, 4
        %999 = vrot.lane.b32.xlu0 %v998, 64
        %v1000 = vpop.permute.xlu0 %999
        %1002 = vst.msk [vmem:[#allocation7 + $0x18] sm:$0xf0] %vm880, %v1000
        %v1003 = vld [vmem:[%s850 + $0x1] sm:$0xf]
        %1005 = vrot.lane.b32.xlu0 %v1003, 64
        %v1006 = vpop.permute.xlu0 %1005
        %1008 = vst.msk [vmem:[#allocation7 + $0x40] sm:$0xf] %vm872, %v1006
        %v1009 = vld [vmem:[%s984 + $0x1] sm:$0xf]
        %v1011 = vrot.slane %v1009, 4
        %1012 = vrot.lane.b32.xlu0 %v1011, 64
        %v1013 = vpop.permute.xlu0 %1012
        %1015 = vst.msk [vmem:[#allocation7 + $0x40] sm:$0xf0] %vm880, %v1013
        %v1016 = vld [vmem:[%s844 + $0x2] sm:$0xf]
        %1017 = vst.msk [vmem:[#allocation7 + $0x20] sm:$0xf] %vm841, %v1016
        %v1018 = vld [vmem:[%s847 + $0x2] sm:$0xf]
        %v1020 = vrot.slane %v1018, 4
        %1022 = vst.msk [vmem:[#allocation7 + $0x20] sm:$0xf0] %vm858, %v1020
        %v1023 = vld [vmem:[%s850 + $0x2] sm:$0xf]
        %1024 = vst.msk [vmem:[#allocation7 + $0x48] sm:$0xf] %vm841, %v1023
        %v1025 = vld [vmem:[%s984 + $0x2] sm:$0xf]
        %v1027 = vrot.slane %v1025, 4
        %1029 = vst.msk [vmem:[#allocation7 + $0x48] sm:$0xf0] %vm858, %v1027
        %v1030 = vld [vmem:[#allocation7] sm:$0xff]
        %v1031 = vld [vmem:[#allocation7 + $0x8] sm:$0xff]
        %v1032 = vld [vmem:[#allocation7 + $0x10] sm:$0xff]
        %v1033 = vld [vmem:[#allocation7 + $0x18] sm:$0xff]
        %v1034 = vld [vmem:[#allocation7 + $0x20] sm:$0xff]
        %v1035 = vld [vmem:[#allocation7 + $0x28] sm:$0xff]
        %v1036 = vld [vmem:[#allocation7 + $0x30] sm:$0xff]
        %v1037 = vld [vmem:[#allocation7 + $0x38] sm:$0xff]
        %v1038 = vld [vmem:[#allocation7 + $0x40] sm:$0xff]
        %v1039 = vld [vmem:[#allocation7 + $0x48] sm:$0xff]
        %v1040 = vld [vmem:[%s5] sm:$0xff]
        %v1041 = vld [vmem:[%s5 + $0x8] sm:$0xff]
        %v1042 = vld [vmem:[%s5 + $0x10] sm:$0xff]
        %v1043 = vld [vmem:[%s5 + $0x18] sm:$0xff]
        %v1044 = vld [vmem:[%s5 + $0x20] sm:$0xff]
        %v1045 = vld [vmem:[%s5 + $0x28] sm:$0xff]
        %v1046 = vld [vmem:[%s5 + $0x30] sm:$0xff]
        %v1047 = vld [vmem:[%s5 + $0x38] sm:$0xff]
        %v1048 = vld [vmem:[%s5 + $0x40] sm:$0xff]
        %v1049 = vld [vmem:[%s5 + $0x48] sm:$0xff]
        %v1050 = vld [vmem:[%s5 + $0x50] sm:$0xff]
        %v1051 = vld [vmem:[%s5 + $0x58] sm:$0xff]
        %v1052 = vld [vmem:[%s5 + $0x60] sm:$0xff]
        %v1053 = vld [vmem:[%s5 + $0x68] sm:$0xff]
        %v1054 = vld [vmem:[%s5 + $0x70] sm:$0xff]
        %v1055 = vld [vmem:[%s5 + $0x78] sm:$0xff]
        %v1056 = vld [vmem:[%s5 + $0x80] sm:$0xff]
        %v1057 = vld [vmem:[%s5 + $0x88] sm:$0xff]
        %v1058 = vld [vmem:[%s5 + $0x90] sm:$0xff]
        %v1059 = vld [vmem:[%s5 + $0x98] sm:$0xff]
        %v1060 = vld [vmem:[%s5 + $0xa0] sm:$0xff]
        %v1061 = vld [vmem:[%s5 + $0xa8] sm:$0xff]
        %v1062 = vld [vmem:[%s5 + $0xb0] sm:$0xff]
        %v1063 = vld [vmem:[%s5 + $0xb8] sm:$0xff]
        %v1064 = vld [vmem:[%s5 + $0xc0] sm:$0xff]
        %v1065 = vld [vmem:[%s5 + $0xc8] sm:$0xff]
        %v1066 = vld [vmem:[%s5 + $0xd0] sm:$0xff]
        %v1067 = vld [vmem:[%s5 + $0xd8] sm:$0xff]
        %v1068 = vld [vmem:[%s5 + $0xe0] sm:$0xff]
        %v1069 = vld [vmem:[%s5 + $0xe8] sm:$0xff]
        %v1070 = vld [vmem:[%s5 + $0xf0] sm:$0xff]
        %v1071 = vld [vmem:[%s5 + $0xf8] sm:$0xff]
        %v1072 = vld [vmem:[%s5 + $0x100] sm:$0xff]
        %v1073 = vld [vmem:[%s5 + $0x108] sm:$0xff]
        %v1074 = vld [vmem:[%s5 + $0x110] sm:$0xff]
        %v1075 = vld [vmem:[%s5 + $0x118] sm:$0xff]
        %v1076 = vld [vmem:[%s5 + $0x120] sm:$0xff]
        %v1077 = vld [vmem:[%s5 + $0x128] sm:$0xff]
        %v1078 = vld [vmem:[%s5 + $0x130] sm:$0xff]
        %v1079 = vld [vmem:[%s5 + $0x138] sm:$0xff]
        %v1080 = vld [vmem:[%s5 + $0x140] sm:$0xff]
        %v1081 = vld [vmem:[%s5 + $0x148] sm:$0xff]
        %v1082 = vld [vmem:[%s5 + $0x150] sm:$0xff]
        %v1083 = vld [vmem:[%s5 + $0x158] sm:$0xff]
        %v1084 = vld [vmem:[%s5 + $0x160] sm:$0xff]
        %v1085 = vld [vmem:[%s5 + $0x168] sm:$0xff]
        %v1086 = vld [vmem:[%s5 + $0x170] sm:$0xff]
        %v1087 = vld [vmem:[%s5 + $0x178] sm:$0xff]
        %v1088 = vld [vmem:[%s5 + $0x180] sm:$0xff]
        %v1089 = vld [vmem:[%s5 + $0x188] sm:$0xff]
        %v1090 = vld [vmem:[%s5 + $0x190] sm:$0xff]
        %v1091 = vld [vmem:[%s5 + $0x198] sm:$0xff]
        %v1092 = vld [vmem:[%s5 + $0x1a0] sm:$0xff]
        %v1093 = vld [vmem:[%s5 + $0x1a8] sm:$0xff]
        %v1094 = vld [vmem:[%s5 + $0x1b0] sm:$0xff]
        %v1095 = vld [vmem:[%s5 + $0x1b8] sm:$0xff]
        %v1096 = vld [vmem:[%s5 + $0x1c0] sm:$0xff]
        %v1097 = vld [vmem:[%s5 + $0x1c8] sm:$0xff]
        %v1098 = vld [vmem:[%s5 + $0x1d0] sm:$0xff]
        %v1099 = vld [vmem:[%s5 + $0x1d8] sm:$0xff]
        %v1100 = vld [vmem:[%s5 + $0x1e0] sm:$0xff]
        %v1101 = vld [vmem:[%s5 + $0x1e8] sm:$0xff]
        %v1102 = vld [vmem:[%s5 + $0x1f0] sm:$0xff]
        %v1103 = vld [vmem:[%s5 + $0x1f8] sm:$0xff]
        %v1104 = vld [vmem:[%s5 + $0x200] sm:$0xff]
        %v1105 = vld [vmem:[%s5 + $0x208] sm:$0xff]
        %v1106 = vld [vmem:[%s5 + $0x210] sm:$0xff]
        %v1107 = vld [vmem:[%s5 + $0x218] sm:$0xff]
        %v1108 = vld [vmem:[%s5 + $0x220] sm:$0xff]
        %v1109 = vld [vmem:[%s5 + $0x228] sm:$0xff]
        %v1110 = vld [vmem:[%s5 + $0x230] sm:$0xff]
        %v1111 = vld [vmem:[%s5 + $0x238] sm:$0xff]
        %v1112 = vld [vmem:[%s6] sm:$0x1]
        %v1114 = vlaneseq
        %v1115 = vshrl.u32 %v1114, 7
        %v1116 = vsub.s32 0, %v1115
        %v1117 = vrot.slane %v1112, %v1116
        %v1120 = vsel %vm303, %v1034, 0
        %v1123 = vsel %vm303, %v1039, 0
        %1125 = vmatprep.subr.mxu0 0.0
        %1126 = vmatpush1.msra.mxu0 %v1055
        %1127 = vmatprep.subr.mxu0 0.0
        %1128 = vmatpush1.msra.mxu0 %v1054
        %1129 = vmatprep.subr.mxu0 0.0
        %1130 = vmatpush1.msra.mxu0 %v1053
        %1131 = vmatprep.subr.mxu0 0.0
        %1132 = vmatpush1.msra.mxu0 %v1052
        %1133 = vmatprep.subr.mxu0 0.0
        %1134 = vmatpush1.msra.mxu0 %v1051
        %1135 = vmatprep.subr.mxu0 0.0
        %1136 = vmatpush1.msra.mxu0 %v1050
        %1137 = vmatprep.subr.mxu0 0.0
        %1138 = vmatpush1.msra.mxu0 %v1049
        %1139 = vmatprep.subr.mxu0 0.0
        %1140 = vmatpush1.msra.mxu0 %v1048
        %1141 = vmatprep.subr.mxu0 0.0
        %1142 = vmatpush1.msra.mxu0 %v1047
        %1143 = vmatprep.subr.mxu0 0.0
        %1144 = vmatpush1.msra.mxu0 %v1046
        %1145 = vmatprep.subr.mxu0 0.0
        %1146 = vmatpush1.msra.mxu0 %v1045
        %1147 = vmatprep.subr.mxu0 0.0
        %1148 = vmatpush1.msra.mxu0 %v1044
        %1149 = vmatprep.subr.mxu0 0.0
        %1150 = vmatpush1.msra.mxu0 %v1043
        %1151 = vmatprep.subr.mxu0 0.0
        %1152 = vmatpush1.msra.mxu0 %v1042
        %1153 = vmatprep.subr.mxu0 0.0
        %1154 = vmatpush1.msra.mxu0 %v1041
        %1155 = vmatprep.subr.mxu0 0.0
        %1156 = vmatpush1.msra.mxu0 %v1040
        %1157 = vmatprep.subr.mxu0 0.0
        %1158 = vmatpush2.msra.mxu0 %v1071
        %1159 = vmatprep.subr.mxu0 0.0
        %1160 = vmatpush2.msra.mxu0 %v1070
        %1161 = vmatprep.subr.mxu0 0.0
        %1162 = vmatpush2.msra.mxu0 %v1069
        %1163 = vmatprep.subr.mxu0 0.0
        %1164 = vmatpush2.msra.mxu0 %v1068
        %1165 = vmatprep.subr.mxu0 0.0
        %1166 = vmatpush2.msra.mxu0 %v1067
        %1167 = vmatprep.subr.mxu0 0.0
        %1168 = vmatpush2.msra.mxu0 %v1066
        %1169 = vmatprep.subr.mxu0 0.0
        %1170 = vmatpush2.msra.mxu0 %v1065
        %1171 = vmatprep.subr.mxu0 0.0
        %1172 = vmatpush2.msra.mxu0 %v1064
        %1173 = vmatprep.subr.mxu0 0.0
        %1174 = vmatpush2.msra.mxu0 %v1063
        %1175 = vmatprep.subr.mxu0 0.0
        %1176 = vmatpush2.msra.mxu0 %v1062
        %1177 = vmatprep.subr.mxu0 0.0
        %1178 = vmatpush2.msra.mxu0 %v1061
        %1179 = vmatprep.subr.mxu0 0.0
        %1180 = vmatpush2.msra.mxu0 %v1060
        %1181 = vmatprep.subr.mxu0 0.0
        %1182 = vmatpush2.msra.mxu0 %v1059
        %1183 = vmatprep.subr.mxu0 0.0
        %1184 = vmatpush2.msra.mxu0 %v1058
        %1185 = vmatprep.subr.mxu0 0.0
        %1186 = vmatpush2.msra.mxu0 %v1057
        %1187 = vmatprep.subr.mxu0 0.0
        %1188 = vmatpush2.msra.mxu0 %v1056
        %1189 = vmatprep.mubr.f32.mxu0 %v1031
        %1190 = vmatmul.mubr.f32.gmra.mxu0 %v1030
        %v1191 = vpop.f32.mrf.mxu0
        %v1192 = vadd.f32 %v1117, %v1191
        %v1193 = vpop.f32.mrf.mxu0
        %1194 = vmatprep.mubr.f32.mxu0 %v1036
        %1195 = vmatmul.mubr.f32.gmra.mxu0 %v1035
        %v1196 = vpop.f32.mrf.mxu0
        %v1197 = vadd.f32 %v1117, %v1196
        %v1198 = vpop.f32.mrf.mxu0
        %1199 = vdwg.mxu0
        %1200 = vmatprep.subr.mxu0 0.0
        %1201 = vmatpush1.msra.mxu0 %v1087
        %1202 = vmatprep.subr.mxu0 0.0
        %1203 = vmatpush1.msra.mxu0 %v1086
        %1204 = vmatprep.subr.mxu0 0.0
        %1205 = vmatpush1.msra.mxu0 %v1085
        %1206 = vmatprep.subr.mxu0 0.0
        %1207 = vmatpush1.msra.mxu0 %v1084
        %1208 = vmatprep.subr.mxu0 0.0
        %1209 = vmatpush1.msra.mxu0 %v1083
        %1210 = vmatprep.subr.mxu0 0.0
        %1211 = vmatpush1.msra.mxu0 %v1082
        %1212 = vmatprep.subr.mxu0 0.0
        %1213 = vmatpush1.msra.mxu0 %v1081
        %1214 = vmatprep.subr.mxu0 0.0
        %1215 = vmatpush1.msra.mxu0 %v1080
        %1216 = vmatprep.subr.mxu0 0.0
        %1217 = vmatpush1.msra.mxu0 %v1079
        %1218 = vmatprep.subr.mxu0 0.0
        %1219 = vmatpush1.msra.mxu0 %v1078
        %1220 = vmatprep.subr.mxu0 0.0
        %1221 = vmatpush1.msra.mxu0 %v1077
        %1222 = vmatprep.subr.mxu0 0.0
        %1223 = vmatpush1.msra.mxu0 %v1076
        %1224 = vmatprep.subr.mxu0 0.0
        %1225 = vmatpush1.msra.mxu0 %v1075
        %1226 = vmatprep.subr.mxu0 0.0
        %1227 = vmatpush1.msra.mxu0 %v1074
        %1228 = vmatprep.subr.mxu0 0.0
        %1229 = vmatpush1.msra.mxu0 %v1073
        %1230 = vmatprep.subr.mxu0 0.0
        %1231 = vmatpush1.msra.mxu0 %v1072
        %1232 = vmatprep.subr.mxu0 0.0
        %1233 = vmatpush2.msra.mxu0 %v1103
        %1234 = vmatprep.subr.mxu0 0.0
        %1235 = vmatpush2.msra.mxu0 %v1102
        %1236 = vmatprep.subr.mxu0 0.0
        %1237 = vmatpush2.msra.mxu0 %v1101
        %1238 = vmatprep.subr.mxu0 0.0
        %1239 = vmatpush2.msra.mxu0 %v1100
        %1240 = vmatprep.subr.mxu0 0.0
        %1241 = vmatpush2.msra.mxu0 %v1099
        %1242 = vmatprep.subr.mxu0 0.0
        %1243 = vmatpush2.msra.mxu0 %v1098
        %1244 = vmatprep.subr.mxu0 0.0
        %1245 = vmatpush2.msra.mxu0 %v1097
        %1246 = vmatprep.subr.mxu0 0.0
        %1247 = vmatpush2.msra.mxu0 %v1096
        %1248 = vmatprep.subr.mxu0 0.0
        %1249 = vmatpush2.msra.mxu0 %v1095
        %1250 = vmatprep.subr.mxu0 0.0
        %1251 = vmatpush2.msra.mxu0 %v1094
        %1252 = vmatprep.subr.mxu0 0.0
        %1253 = vmatpush2.msra.mxu0 %v1093
        %1254 = vmatprep.subr.mxu0 0.0
        %1255 = vmatpush2.msra.mxu0 %v1092
        %1256 = vmatprep.subr.mxu0 0.0
        %1257 = vmatpush2.msra.mxu0 %v1091
        %1258 = vmatprep.subr.mxu0 0.0
        %1259 = vmatpush2.msra.mxu0 %v1090
        %1260 = vmatprep.subr.mxu0 0.0
        %1261 = vmatpush2.msra.mxu0 %v1089
        %1262 = vmatprep.subr.mxu0 0.0
        %1263 = vmatpush2.msra.mxu0 %v1088
        %1264 = vmatprep.mubr.f32.mxu0 %v1033
        %1265 = vmatmul.mubr.f32.gmra.mxu0 %v1032
        %v1266 = vpop.f32.mrf.mxu0
        %v1267 = vadd.f32 %v1192, %v1266
        %v1268 = vpop.f32.mrf.mxu0
        %1269 = vmatprep.mubr.f32.mxu0 %v1038
        %1270 = vmatmul.mubr.f32.gmra.mxu0 %v1037
        %v1271 = vpop.f32.mrf.mxu0
        %v1272 = vadd.f32 %v1197, %v1271
        %v1273 = vpop.f32.mrf.mxu0
        %1274 = vdwg.mxu0
        %1275 = vmatprep.subr.mxu0 0.0
        %1276 = vmatpush1.msra.mxu0 0.0
        %1277 = vmatprep.subr.mxu0 0.0
        %1278 = vmatpush1.msra.mxu0 0.0
        %1279 = vmatprep.subr.mxu0 0.0
        %1280 = vmatpush1.msra.mxu0 0.0
        %1281 = vmatprep.subr.mxu0 0.0
        %1282 = vmatpush1.msra.mxu0 0.0
        %1283 = vmatprep.subr.mxu0 0.0
        %1284 = vmatpush1.msra.mxu0 0.0
        %1285 = vmatprep.subr.mxu0 0.0
        %1286 = vmatpush1.msra.mxu0 0.0
        %1287 = vmatprep.subr.mxu0 0.0
        %1288 = vmatpush1.msra.mxu0 0.0
        %1289 = vmatprep.subr.mxu0 0.0
        %1290 = vmatpush1.msra.mxu0 0.0
        %1291 = vmatprep.subr.mxu0 0.0
        %1292 = vmatpush1.msra.mxu0 %v1111
        %1293 = vmatprep.subr.mxu0 0.0
        %1294 = vmatpush1.msra.mxu0 %v1110
        %1295 = vmatprep.subr.mxu0 0.0
        %1296 = vmatpush1.msra.mxu0 %v1109
        %1297 = vmatprep.subr.mxu0 0.0
        %1298 = vmatpush1.msra.mxu0 %v1108
        %1299 = vmatprep.subr.mxu0 0.0
        %1300 = vmatpush1.msra.mxu0 %v1107
        %1301 = vmatprep.subr.mxu0 0.0
        %1302 = vmatpush1.msra.mxu0 %v1106
        %1303 = vmatprep.subr.mxu0 0.0
        %1304 = vmatpush1.msra.mxu0 %v1105
        %1305 = vmatprep.subr.mxu0 0.0
        %1306 = vmatpush1.msra.mxu0 %v1104
        %1307 = vmatprep.subr.mxu0 0.0
        %1308 = vmatpush2.msra.mxu0 0.0
        %1309 = vmatprep.subr.mxu0 0.0
        %1310 = vmatpush2.msra.mxu0 0.0
        %1311 = vmatprep.subr.mxu0 0.0
        %1312 = vmatpush2.msra.mxu0 0.0
        %1313 = vmatprep.subr.mxu0 0.0
        %1314 = vmatpush2.msra.mxu0 0.0
        %1315 = vmatprep.subr.mxu0 0.0
        %1316 = vmatpush2.msra.mxu0 0.0
        %1317 = vmatprep.subr.mxu0 0.0
        %1318 = vmatpush2.msra.mxu0 0.0
        %1319 = vmatprep.subr.mxu0 0.0
        %1320 = vmatpush2.msra.mxu0 0.0
        %1321 = vmatprep.subr.mxu0 0.0
        %1322 = vmatpush2.msra.mxu0 0.0
        %1323 = vmatprep.subr.mxu0 0.0
        %1324 = vmatpush2.msra.mxu0 0.0
        %1325 = vmatprep.subr.mxu0 0.0
        %1326 = vmatpush2.msra.mxu0 0.0
        %1327 = vmatprep.subr.mxu0 0.0
        %1328 = vmatpush2.msra.mxu0 0.0
        %1329 = vmatprep.subr.mxu0 0.0
        %1330 = vmatpush2.msra.mxu0 0.0
        %1331 = vmatprep.subr.mxu0 0.0
        %1332 = vmatpush2.msra.mxu0 0.0
        %1333 = vmatprep.subr.mxu0 0.0
        %1334 = vmatpush2.msra.mxu0 0.0
        %1335 = vmatprep.subr.mxu0 0.0
        %1336 = vmatpush2.msra.mxu0 0.0
        %1337 = vmatprep.subr.mxu0 0.0
        %1338 = vmatpush2.msra.mxu0 0.0
        %1339 = vmatprep.mubr.f32.mxu0 0.0
        %1340 = vmatmul.mubr.f32.gmra.mxu0 %v1120
        %v1341 = vpop.f32.mrf.mxu0
        %v1342 = vadd.f32 %v1267, %v1341
        %v1343 = vpop.f32.mrf.mxu0
        %1344 = vmatprep.mubr.f32.mxu0 0.0
        %1345 = vmatmul.mubr.f32.gmra.mxu0 %v1123
        %v1346 = vpop.f32.mrf.mxu0
        %v1347 = vadd.f32 %v1272, %v1346
        %v1348 = vpop.f32.mrf.mxu0
        %1349 = vdwg.mxu0
        %vm1350 = vcmask 130048
        %1351 = vst.msk [vmem:[%s272] sm:$0xff] %vm1350, %v1342
        %1352 = vst.msk [vmem:[%s272 + $0x8] sm:$0xff] %vm1350, %v1347
        %s1353 = sand.u32 %s181, 1
        %s1354 = scalar_lea.sflag [#allocation9], %s1353
        %s1355 = sand.u32 %s181, 1
        %s1356 = smul.addr %s1355, 16
        %s1357 = scalar_lea.vmem [#allocation8], %s1356
        // Predicated region
        $region49: #{encoder_forward.1} parent=47 // pred_check
          %p1358 = pneg %p191
        $region50: #{encoder_forward.1} parent=47 // pred_check_branch
          %1360 = sbr.rel (%p1358) target = $region52
        $region51: #{encoder_forward.1} parent=47 // pred_region
          %s1361 = smul.u32 2, %s21
          %s1363 = ssub.s32 256, 256
          %1364 = vsyncadd %s1354, %s1363
          %s1365 = smul.addr %s1361, 128
          %s1366 = scalar_lea.hbm %s7, %s1365
          %s1367 = sshll.u32 %s1357, 4
          %s1368 = int_to_ptr.vmem [resolvable:$true] %s1367
          %1373 = dma.vmem_to_hbm [thread:$0]  %s1368, 256, %s1366, %s1354, 128, 128, 8
        $region52: #{encoder_forward.1} parent=47 // pred_fallthru
          _
      $region48: #{encoder_forward.1} parent=5 // pred_fallthru
        _
      %p1374 = scmp.le.s32.totalorder 2, %s16
      // Predicated region
      $region53: #{encoder_forward.1} parent=5 // pred_check
        %p1375 = pneg %p1374
      $region54: #{encoder_forward.1} parent=5 // pred_check_branch
        %1377 = sbr.rel (%p1375) target = $region56
      $region55: #{encoder_forward.1} parent=5 // pred_region
        %s1378 = ssub.s32 %s16, 2
        // Predicated region
        $region57: #{encoder_forward.1} parent=55 // pred_check
          %p1379 = pneg %p197
        $region58: #{encoder_forward.1} parent=55 // pred_check_branch
          %1381 = sbr.rel (%p1379) target = $region60
        $region59: #{encoder_forward.1} parent=55 // pred_region
          %s1382 = sand.u32 %s182, 1
          %s1383 = scalar_lea.sflag [#allocation9], %s1382
          %s1384 = sand.u32 %s182, 1
          %s1385 = smul.addr %s1384, 16
          %s1386 = scalar_lea.vmem [#allocation8], %s1385
          %1387 = dma.done %s1383, 256
        $region60: #{encoder_forward.1} parent=55 // pred_fallthru
          _
      $region56: #{encoder_forward.1} parent=5 // pred_fallthru
        _
    $region6: #{encoder_forward.1} parent=1 // loop_footer
      %s20 = sadd.s32 1, %s16
    $region7: #{encoder_forward.1} parent=1 // loop_footer_branch
      %15 = sbr.rel target = $region3
    $region8: #{encoder_forward.1} parent=1 // loop_exit
      _
    %1388 = vsyncpa [#allocation9], 1
    %s1389 = scalar_lea.sflag [#allocation9], 1
    %1390 = vsyncpa %s1389, 1

</llo_original>
